<compile_context>
chip_gen: v7x
topology: tpu7x:2x2x1
jax: 0.10.0
libtpu: 0.0.40
codegen_flags: <defaults>
</compile_context>

<pallas_src>
import functools
import math

import jax
import jax.numpy as jnp
from jax.experimental import pallas as pl
from jax.experimental.pallas import tpu as pltpu


_VMEM_LIMIT = 48 * 1024 * 1024  # fits v7x 64 MiB physical; ample on v5e/v6e


def _tile(dim, pref):
    """Largest divisor of `dim` that is <= pref (tiling is never disabled)."""
    if dim <= pref:
        return dim
    for t in range(pref, 0, -1):
        if dim % t == 0:
            return t
    return dim


def _cparams(dims):
    return pltpu.CompilerParams(dimension_semantics=dims,
                                vmem_limit_bytes=_VMEM_LIMIT)


# --------------------------------------------------------------------------
# fused LayerNorm -> matmul (+bias, optional GELU)
#   grid = (M//tm, N//tn); K (= hidden D) stays whole so LN stats are exact.
#   Normalized bf16 activations cached in VMEM scratch at j == 0.
# --------------------------------------------------------------------------

def _ln_matmul_kernel(x_ref, g_ref, b_ref, w_ref, bias_ref, o_ref, xn_ref,
                      *, gelu):
    @pl.when(pl.program_id(1) == 0)
    def _():
        x = x_ref[...]                                # [tm, D] f32
        mu = jnp.mean(x, axis=-1, keepdims=True)
        xc = x - mu
        var = jnp.mean(xc * xc, axis=-1, keepdims=True)
        xn = xc * jax.lax.rsqrt(var + 1e-5) * g_ref[...] + b_ref[...]
        xn_ref[...] = xn.astype(jnp.bfloat16)

    h = jnp.dot(xn_ref[...], w_ref[...],
                preferred_element_type=jnp.float32) + bias_ref[...]
    if gelu:
        # GPT-2 "gelu_new" (tanh approximation), f32 on the VPU/EUP.
        c = 0.7978845608028654  # sqrt(2/pi)
        h = 0.5 * h * (1.0 + jnp.tanh(c * (h + 0.044715 * h * h * h)))
    o_ref[...] = h.astype(o_ref.dtype)


def ln_matmul_bias(x, gamma, beta, w, bias, *, gelu=False,
                   out_dtype=jnp.bfloat16, tm_pref=512, tn_pref=1536):
    """y = act(LN(x) @ w + bias);  x:[M,D] f32, w:[D,N] bf16 -> [M,N]."""
    M, D = x.shape
    N = w.shape[1]
    tm = _tile(M, tm_pref)
    tn = _tile(N, tn_pref)
    out_bytes = M * N * jnp.dtype(out_dtype).itemsize
    return pl.pallas_call(
        functools.partial(_ln_matmul_kernel, gelu=gelu),
        grid=(M // tm, N // tn),
        in_specs=[
            pl.BlockSpec((tm, D), lambda i, j: (i, 0)),
            pl.BlockSpec((1, D), lambda i, j: (0, 0)),
            pl.BlockSpec((1, D), lambda i, j: (0, 0)),
            pl.BlockSpec((D, tn), lambda i, j: (0, j)),
            pl.BlockSpec((1, tn), lambda i, j: (0, j)),
        ],
        out_specs=pl.BlockSpec((tm, tn), lambda i, j: (i, j)),
        out_shape=jax.ShapeDtypeStruct((M, N), out_dtype),
        scratch_shapes=[pltpu.VMEM((tm, D), jnp.bfloat16)],
        compiler_params=_cparams(("parallel", "arbitrary")),
        cost_estimate=pl.CostEstimate(
            flops=2 * M * N * D,
            transcendentals=(M * N if gelu else 0),
            bytes_accessed=int(M * D * 4 + D * N * 2 + N * 4 + out_bytes)),
    )(x, gamma.reshape(1, D), beta.reshape(1, D), w, bias.reshape(1, N))


# --------------------------------------------------------------------------
# fused LayerNorm -> tied LM head (logits = LN(x) @ wte^T), vocab-tiled.
#   tm covers the full M so wte streams from HBM exactly once; LN result is
#   cached in VMEM scratch; dot_general contracts last dims (no in-kernel .T)
# --------------------------------------------------------------------------

def _ln_lmhead_kernel(x_ref, g_ref, b_ref, wte_ref, o_ref, xn_ref):
    @pl.when(pl.program_id(1) == 0)
    def _():
        x = x_ref[...]                                # [tm, D] f32
        mu = jnp.mean(x, axis=-1, keepdims=True)
        xc = x - mu
        var = jnp.mean(xc * xc, axis=-1, keepdims=True)
        xn_ref[...] = (xc * jax.lax.rsqrt(var + 1e-5) * g_ref[...]
                       + b_ref[...]).astype(jnp.bfloat16)

    o_ref[...] = jax.lax.dot_general(
        xn_ref[...], wte_ref[...],                    # wte tile: [tn, D] bf16
        (((1,), (1,)), ((), ())),
        preferred_element_type=jnp.float32)


def ln_lm_head(x, gamma, beta, wte, *, tm_pref=4096, tn_pref=512):
    M, D = x.shape
    V = wte.shape[0]
    tm = _tile(M, tm_pref)                            # keep whole M resident
    tn = _tile(V, tn_pref)                            # lane-dense vocab tiles
    return pl.pallas_call(
        _ln_lmhead_kernel,
        grid=(M // tm, V // tn),
        in_specs=[
            pl.BlockSpec((tm, D), lambda i, j: (i, 0)),
            pl.BlockSpec((1, D), lambda i, j: (0, 0)),
            pl.BlockSpec((1, D), lambda i, j: (0, 0)),
            pl.BlockSpec((tn, D), lambda i, j: (j, 0)),
        ],
        out_specs=pl.BlockSpec((tm, tn), lambda i, j: (i, j)),
        out_shape=jax.ShapeDtypeStruct((M, V), jnp.float32),
        scratch_shapes=[pltpu.VMEM((tm, D), jnp.bfloat16)],
        compiler_params=_cparams(("parallel", "arbitrary")),
        cost_estimate=pl.CostEstimate(
            flops=2 * M * V * D, transcendentals=0,
            bytes_accessed=int(M * D * 4 + V * D * 2 + M * V * 4)),
    )(x, gamma.reshape(1, D), beta.reshape(1, D), wte)


# --------------------------------------------------------------------------
# matmul + bias + fused residual add (attention / MLP projections)
#   grid = (M//tm, N//tn); K stays whole (D / 4D are small) -> no K axis,
#   no accumulator revisit, both grid axes "parallel" for megacore.
# --------------------------------------------------------------------------

def _matmul_bias_res_kernel(x_ref, w_ref, bias_ref, res_ref, o_ref):
    h = jnp.dot(x_ref[...], w_ref[...], preferred_element_type=jnp.float32)
    o_ref[...] = h + bias_ref[...] + res_ref[...]


def matmul_bias_residual(x, w, bias, res, *, tm_pref=512, tn_pref=1024):
    """y = x @ w + bias + res;  x:[M,K] bf16, w:[K,N] bf16, res:[M,N] f32."""
    M, K = x.shape
    N = w.shape[1]
    tm = _tile(M, tm_pref)
    tn = _tile(N, tn_pref)
    return pl.pallas_call(
        _matmul_bias_res_kernel,
        grid=(M // tm, N // tn),
        in_specs=[
            pl.BlockSpec((tm, K), lambda i, j: (i, 0)),
            pl.BlockSpec((K, tn), lambda i, j: (0, j)),
            pl.BlockSpec((1, tn), lambda i, j: (0, j)),
            pl.BlockSpec((tm, tn), lambda i, j: (i, j)),
        ],
        out_specs=pl.BlockSpec((tm, tn), lambda i, j: (i, j)),
        out_shape=jax.ShapeDtypeStruct((M, N), jnp.float32),
        compiler_params=_cparams(("parallel", "parallel")),
        cost_estimate=pl.CostEstimate(
            flops=2 * M * N * K, transcendentals=0,
            bytes_accessed=int(M * K * 2 + K * N * 2 + 2 * M * N * 4 + N * 4)),
    )(x, w, bias.reshape(1, N), res)


# --------------------------------------------------------------------------
# flash-style causal multi-head attention
#   q/k/v head-major [B, H, T, d_head] bf16; grid (B, H, T//tq, T//tk) with
#   the KV axis innermost ("arbitrary"); online softmax in VMEM scratch;
#   causal block skipping; per-tile iota mask.
# --------------------------------------------------------------------------

def _flash_attn_kernel(q_ref, k_ref, v_ref, o_ref, m_ref, l_ref, acc_ref,
                       *, scale, tq, tk):
    qi = pl.program_id(2)
    ki = pl.program_id(3)

    @pl.when(ki == 0)
    def _():
        m_ref[...] = jnp.full_like(m_ref, -jnp.inf)
        l_ref[...] = jnp.zeros_like(l_ref)
        acc_ref[...] = jnp.zeros_like(acc_ref)

    # Skip KV blocks entirely above the causal diagonal.
    @pl.when(ki * tk <= qi * tq + (tq - 1))
    def _():
        q = q_ref[0, 0]                               # [tq, dh] bf16
        k = k_ref[0, 0]                               # [tk, dh] bf16
        v = v_ref[0, 0]                               # [tk, dh] bf16
        s = jax.lax.dot_general(q, k, (((1,), (1,)), ((), ())),
                                preferred_element_type=jnp.float32) * scale
        row = qi * tq + jax.lax.broadcasted_iota(jnp.int32, (tq, tk), 0)
        col = ki * tk + jax.lax.broadcasted_iota(jnp.int32, (tq, tk), 1)
        s = jnp.where(col <= row, s, -1e30)

        m_prev = m_ref[...]
        m_new = jnp.maximum(m_prev, jnp.max(s, axis=-1, keepdims=True))
        alpha = jnp.exp(m_prev - m_new)
        p = jnp.exp(s - m_new)
        l_ref[...] = alpha * l_ref[...] + jnp.sum(p, axis=-1, keepdims=True)
        acc_ref[...] = alpha * acc_ref[...] + jnp.dot(
            p.astype(jnp.bfloat16), v, preferred_element_type=jnp.float32)
        m_ref[...] = m_new

    @pl.when(ki == pl.num_programs(3) - 1)
    def _():
        o_ref[0, 0] = (acc_ref[...] / l_ref[...]).astype(o_ref.dtype)


def flash_attention(q, k, v, *, tq_pref=256, tk_pref=512):
    """q,k,v: [B, H, T, dh] bf16 -> [B, H, T, dh] bf16 (causal)."""
    B, H, T, dh = q.shape
    tq = _tile(T, tq_pref)
    tk = _tile(T, tk_pref)
    kernel = functools.partial(_flash_attn_kernel,
                               scale=1.0 / math.sqrt(dh), tq=tq, tk=tk)
    q_spec = pl.BlockSpec((1, 1, tq, dh), lambda b, h, qi, ki: (b, h, qi, 0))
    kv_spec = pl.BlockSpec((1, 1, tk, dh), lambda b, h, qi, ki: (b, h, ki, 0))
    return pl.pallas_call(
        kernel,
        grid=(B, H, T // tq, T // tk),
        in_specs=[q_spec, kv_spec, kv_spec],
        out_specs=pl.BlockSpec((1, 1, tq, dh),
                               lambda b, h, qi, ki: (b, h, qi, 0)),
        out_shape=jax.ShapeDtypeStruct((B, H, T, dh), jnp.bfloat16),
        scratch_shapes=[pltpu.VMEM((tq, 1), jnp.float32),
                        pltpu.VMEM((tq, 1), jnp.float32),
                        pltpu.VMEM((tq, dh), jnp.float32)],
        compiler_params=_cparams(
            ("parallel", "parallel", "parallel", "arbitrary")),
        cost_estimate=pl.CostEstimate(
            flops=2 * B * H * T * T * dh,  # upper bound (causal skips ~half)
            transcendentals=B * H * T * T,
            bytes_accessed=int(3 * B * H * T * dh * 2 + B * H * T * dh * 2)),
    )(q, k, v)


# --------------------------------------------------------------------------
# GPT-2 forward (glue in plain JAX; heavy compute in the Pallas kernels above)
# --------------------------------------------------------------------------

def gpt2_logits(params, input_ids, *, n_head):
    B, T = input_ids.shape
    wte = params["wte"]                               # [V, D] bf16
    wpe = params["wpe"]                               # [P, D] bf16
    D = wte.shape[1]
    dh = D // n_head

    # Embedding gather (glue, not a Pallas hot path). Residual stream is f32.
    pos = jnp.arange(T, dtype=jnp.int32)
    h = (jnp.take(wte, input_ids, axis=0).astype(jnp.float32)
         + jnp.take(wpe, pos, axis=0)[None].astype(jnp.float32))
    x = h.reshape(B * T, D)

    for layer in params["layers"]:
        # --- self-attention block: LN1 fused into the qkv matmul ---
        qkv = ln_matmul_bias(x, layer["ln1_g"], layer["ln1_b"],
                             layer["attn_w"], layer["attn_b"],
                             out_dtype=jnp.bfloat16)          # [BT, 3D] bf16
        # head-major layout permute (one-shot XLA transpose, glue only)
        qkv = qkv.reshape(B, T, 3, n_head, dh)
        qkv = jnp.transpose(qkv, (2, 0, 3, 1, 4))             # [3,B,H,T,dh]
        a = flash_attention(qkv[0], qkv[1], qkv[2])           # [B,H,T,dh]
        a = jnp.transpose(a, (0, 2, 1, 3)).reshape(B * T, D)  # [BT, D] bf16
        x = matmul_bias_residual(a, layer["attn_proj_w"],
                                 layer["attn_proj_b"], x)     # residual fused

        # --- MLP block: LN2 + GELU fused into the fc matmul ---
        hmid = ln_matmul_bias(x, layer["ln2_g"], layer["ln2_b"],
                              layer["fc_w"], layer["fc_b"],
                              gelu=True, out_dtype=jnp.bfloat16)  # [BT, 4D]
        x = matmul_bias_residual(hmid, layer["mlp_proj_w"],
                                 layer["mlp_proj_b"], x)      # residual fused

    # final LN fused into the vocab-tiled, weight-tied LM head
    logits = ln_lm_head(x, params["lnf_g"], params["lnf_b"], wte)  # [BT, V]
    return logits.reshape(B, T, -1)


# --------------------------------------------------------------------------
# Deterministic parameter init (synthetic stand-in for skt/kogpt2-base-v2)
# --------------------------------------------------------------------------

def init_params(key, *, vocab, n_pos, n_embd, n_layer):
    def normal(k, shape, std=0.02):
        return (std * jax.random.normal(k, shape)).astype(jnp.bfloat16)

    keys = iter(jax.random.split(key, 4 + 4 * n_layer))
    params = {
        "wte": normal(next(keys), (vocab, n_embd)),
        "wpe": normal(next(keys), (n_pos, n_embd), std=0.01),
        "lnf_g": jnp.ones((n_embd,), jnp.float32),
        "lnf_b": jnp.zeros((n_embd,), jnp.float32),
        "layers": [],
    }
    for _ in range(n_layer):
        layer = {
            "ln1_g": jnp.ones((n_embd,), jnp.float32),
            "ln1_b": jnp.zeros((n_embd,), jnp.float32),
            "attn_w": normal(next(keys), (n_embd, 3 * n_embd)),
            "attn_b": jnp.zeros((3 * n_embd,), jnp.float32),
            "attn_proj_w": normal(next(keys), (n_embd, n_embd)),
            "attn_proj_b": jnp.zeros((n_embd,), jnp.float32),
            "ln2_g": jnp.ones((n_embd,), jnp.float32),
            "ln2_b": jnp.zeros((n_embd,), jnp.float32),
            "fc_w": normal(next(keys), (n_embd, 4 * n_embd)),
            "fc_b": jnp.zeros((4 * n_embd,), jnp.float32),
            "mlp_proj_w": normal(next(keys), (4 * n_embd, n_embd)),
            "mlp_proj_b": jnp.zeros((n_embd,), jnp.float32),
        }
        params["layers"].append(layer)
    return params


# --------------------------------------------------------------------------

if __name__ == "__main__":
    # small config consistent with a GPT-2 LM head forward
    B, T = 2, 8
    VOCAB, N_POS, N_EMBD, N_HEAD, N_LAYER = 64, 16, 32, 4, 2

    key = jax.random.PRNGKey(0)
    k_params, k_ids = jax.random.split(key)
    params = init_params(
        k_params, vocab=VOCAB, n_pos=N_POS, n_embd=N_EMBD, n_layer=N_LAYER
    )
    input_ids = jax.random.randint(k_ids, (B, T), 0, VOCAB, dtype=jnp.int32)

    fwd = jax.jit(functools.partial(gpt2_logits, n_head=N_HEAD))
    logits = fwd(params, input_ids)
    jax.block_until_ready(logits)

    assert logits.shape == (B, T, VOCAB), logits.shape
    assert logits.dtype == jnp.float32
    assert bool(jnp.all(jnp.isfinite(logits)))
    print("KERNEL_OK")
</pallas_src>

<mosaic_0001>
module attributes {stable_mosaic.version = 11 : i64} {
  func.func @_ln_matmul_kernel(%arg0: i32, %arg1: i32, %arg2: memref<16x32xf32, #tpu.memory_space<vmem>>, %arg3: memref<1x32xf32, #tpu.memory_space<vmem>>, %arg4: memref<1x32xf32, #tpu.memory_space<vmem>>, %arg5: memref<32x96xbf16, #tpu.memory_space<vmem>>, %arg6: memref<1x96xf32, #tpu.memory_space<vmem>>, %arg7: memref<16x96xbf16, #tpu.memory_space<vmem>>, %arg8: memref<16x32xbf16, #tpu.memory_space<vmem>>) attributes {dimension_semantics = [#tpu.dimension_semantics<parallel>, #tpu.dimension_semantics<arbitrary>], iteration_bounds = array<i64: 1, 1>, scalar_prefetch = 0 : i64, scratch_operands = 1 : i64, tpu.core_type = #tpu.core_type<tc>, window_params = [{transform_indices = @transform_0, window_bounds = array<i64: 16, 32>}, {pipeline_mode = #tpu.pipeline_mode<synchronous>, transform_indices = @transform_1, window_bounds = array<i64: 1, 32>}, {pipeline_mode = #tpu.pipeline_mode<synchronous>, transform_indices = @transform_2, window_bounds = array<i64: 1, 32>}, {transform_indices = @transform_3, window_bounds = array<i64: 32, 96>}, {transform_indices = @transform_4, window_bounds = array<i64: 1, 96>}, {transform_indices = @transform_5, window_bounds = array<i64: 16, 96>}]} {
    %c0_i32 = arith.constant 0 : i32
    %0 = arith.cmpi eq, %arg1, %c0_i32 : i32
    %1 = arith.extui %0 : i1 to i32
    %c0_i32_0 = arith.constant 0 : i32
    %2 = arith.cmpi ne, %1, %c0_i32_0 : i32
    scf.if %2 {
      %c0_8 = arith.constant 0 : index
      %c0_9 = arith.constant 0 : index
      %11 = vector.load %arg2[%c0_8, %c0_9] : memref<16x32xf32, #tpu.memory_space<vmem>>, vector<16x32xf32>
      %cst_10 = arith.constant dense<0.000000e+00> : vector<16xf32>
      %12 = vector.multi_reduction <add>, %11, %cst_10 [1] : vector<16x32xf32> to vector<16xf32>
      %13 = vector.shape_cast %12 : vector<16xf32> to vector<16x1xf32>
      %cst_11 = arith.constant 3.200000e+01 : f32
      %14 = vector.broadcast %cst_11 : f32 to vector<16x1xf32>
      %15 = arith.divf %13, %14 : vector<16x1xf32>
      %16 = vector.broadcast %15 : vector<16x1xf32> to vector<16x32xf32>
      %17 = arith.subf %11, %16 : vector<16x32xf32>
      %18 = arith.mulf %17, %17 : vector<16x32xf32>
      %cst_12 = arith.constant dense<0.000000e+00> : vector<16xf32>
      %19 = vector.multi_reduction <add>, %18, %cst_12 [1] : vector<16x32xf32> to vector<16xf32>
      %20 = vector.shape_cast %19 : vector<16xf32> to vector<16x1xf32>
      %cst_13 = arith.constant 3.200000e+01 : f32
      %21 = vector.broadcast %cst_13 : f32 to vector<16x1xf32>
      %22 = arith.divf %20, %21 : vector<16x1xf32>
      %cst_14 = arith.constant 9.99999974E-6 : f32
      %23 = vector.broadcast %cst_14 : f32 to vector<16x1xf32>
      %24 = arith.addf %22, %23 : vector<16x1xf32>
      %25 = math.rsqrt %24 : vector<16x1xf32>
      %26 = vector.broadcast %25 : vector<16x1xf32> to vector<16x32xf32>
      %27 = arith.mulf %17, %26 : vector<16x32xf32>
      %c0_15 = arith.constant 0 : index
      %c0_16 = arith.constant 0 : index
      %28 = vector.load %arg3[%c0_15, %c0_16] : memref<1x32xf32, #tpu.memory_space<vmem>>, vector<1x32xf32>
      %29 = vector.broadcast %28 : vector<1x32xf32> to vector<16x32xf32>
      %30 = arith.mulf %27, %29 : vector<16x32xf32>
      %c0_17 = arith.constant 0 : index
      %c0_18 = arith.constant 0 : index
      %31 = vector.load %arg4[%c0_17, %c0_18] : memref<1x32xf32, #tpu.memory_space<vmem>>, vector<1x32xf32>
      %32 = vector.broadcast %31 : vector<1x32xf32> to vector<16x32xf32>
      %33 = arith.addf %30, %32 : vector<16x32xf32>
      %34 = arith.truncf %33 : vector<16x32xf32> to vector<16x32xbf16>
      %c0_19 = arith.constant 0 : index
      %c0_20 = arith.constant 0 : index
      %35 = vector.load %arg8[%c0_19, %c0_20] : memref<16x32xbf16, #tpu.memory_space<vmem>>, vector<16x32xbf16>
      tpu.vector_store %arg8[%c0_19, %c0_20], %34 {strides = array<i32>} : memref<16x32xbf16, #tpu.memory_space<vmem>>, vector<16x32xbf16>,
    } else {
    }
    %c0 = arith.constant 0 : index
    %c0_1 = arith.constant 0 : index
    %3 = vector.load %arg8[%c0, %c0_1] : memref<16x32xbf16, #tpu.memory_space<vmem>>, vector<16x32xbf16>
    %c0_2 = arith.constant 0 : index
    %c0_3 = arith.constant 0 : index
    %4 = vector.load %arg5[%c0_2, %c0_3] : memref<32x96xbf16, #tpu.memory_space<vmem>>, vector<32x96xbf16>
    %cst = arith.constant dense<0.000000e+00> : vector<16x96xf32>
    %5 = tpu.matmul %3, %4, %cst {dimension_numbers = #tpu.dot_dimension_numbers<[1], [0], [0], [1], [0, 0, 1, 1], [], []>} : vector<16x32xbf16>, vector<32x96xbf16>, vector<16x96xf32> -> vector<16x96xf32>
    %c0_4 = arith.constant 0 : index
    %c0_5 = arith.constant 0 : index
    %6 = vector.load %arg6[%c0_4, %c0_5] : memref<1x96xf32, #tpu.memory_space<vmem>>, vector<1x96xf32>
    %7 = vector.broadcast %6 : vector<1x96xf32> to vector<16x96xf32>
    %8 = arith.addf %5, %7 : vector<16x96xf32>
    %9 = arith.truncf %8 : vector<16x96xf32> to vector<16x96xbf16>
    %c0_6 = arith.constant 0 : index
    %c0_7 = arith.constant 0 : index
    %10 = vector.load %arg7[%c0_6, %c0_7] : memref<16x96xbf16, #tpu.memory_space<vmem>>, vector<16x96xbf16>
    tpu.vector_store %arg7[%c0_6, %c0_7], %9 {strides = array<i32>} : memref<16x96xbf16, #tpu.memory_space<vmem>>, vector<16x96xbf16>,
    return
  }
  func.func @transform_0(%arg0: i32, %arg1: i32) -> (i32, i32) {
    %c0_i32 = arith.constant 0 : i32
    %c0_i32_0 = arith.constant 0 : i32
    return %arg0, %c0_i32 : i32, i32
  }
  func.func @transform_1(%arg0: i32, %arg1: i32) -> (i32, i32) {
    %c0_i32 = arith.constant 0 : i32
    %c0_i32_0 = arith.constant 0 : i32
    %c0_i32_1 = arith.constant 0 : i32
    return %c0_i32, %c0_i32_0 : i32, i32
  }
  func.func @transform_2(%arg0: i32, %arg1: i32) -> (i32, i32) {
    %c0_i32 = arith.constant 0 : i32
    %c0_i32_0 = arith.constant 0 : i32
    %c0_i32_1 = arith.constant 0 : i32
    return %c0_i32, %c0_i32_0 : i32, i32
  }
  func.func @transform_3(%arg0: i32, %arg1: i32) -> (i32, i32) {
    %c0_i32 = arith.constant 0 : i32
    %c0_i32_0 = arith.constant 0 : i32
    return %c0_i32, %arg1 : i32, i32
  }
  func.func @transform_4(%arg0: i32, %arg1: i32) -> (i32, i32) {
    %c0_i32 = arith.constant 0 : i32
    %c0_i32_0 = arith.constant 0 : i32
    return %c0_i32, %arg1 : i32, i32
  }
  func.func @transform_5(%arg0: i32, %arg1: i32) -> (i32, i32) {
    %c0_i32 = arith.constant 0 : i32
    return %arg0, %arg1 : i32, i32
  }
}

module attributes {stable_mosaic.version = 11 : i64} {
  func.func @_flash_attn_kernel(%arg0: i32, %arg1: i32, %arg2: i32, %arg3: i32, %arg4: memref<1x1x8x8xbf16, #tpu.memory_space<vmem>>, %arg5: memref<1x1x8x8xbf16, #tpu.memory_space<vmem>>, %arg6: memref<1x1x8x8xbf16, #tpu.memory_space<vmem>>, %arg7: memref<1x1x8x8xbf16, #tpu.memory_space<vmem>>, %arg8: memref<8x1xf32, #tpu.memory_space<vmem>>, %arg9: memref<8x1xf32, #tpu.memory_space<vmem>>, %arg10: memref<8x8xf32, #tpu.memory_space<vmem>>) attributes {dimension_semantics = [#tpu.dimension_semantics<parallel>, #tpu.dimension_semantics<parallel>, #tpu.dimension_semantics<parallel>, #tpu.dimension_semantics<arbitrary>], iteration_bounds = array<i64: 2, 4, 1, 1>, scalar_prefetch = 0 : i64, scratch_operands = 3 : i64, tpu.core_type = #tpu.core_type<tc>, window_params = [{transform_indices = @transform_0, window_bounds = array<i64: 1, 1, 8, 8>}, {transform_indices = @transform_1, window_bounds = array<i64: 1, 1, 8, 8>}, {transform_indices = @transform_2, window_bounds = array<i64: 1, 1, 8, 8>}, {transform_indices = @transform_3, window_bounds = array<i64: 1, 1, 8, 8>}]} {
    %c0_i32 = arith.constant 0 : i32
    %0 = arith.cmpi eq, %arg3, %c0_i32 : i32
    %1 = arith.extui %0 : i1 to i32
    %c0_i32_0 = arith.constant 0 : i32
    %2 = arith.cmpi ne, %1, %c0_i32_0 : i32
    scf.if %2 {
      %cst = arith.constant 0xFF800000 : f32
      %12 = vector.broadcast %cst : f32 to vector<8x1xf32>
      %c0 = arith.constant 0 : index
      %c0_5 = arith.constant 0 : index
      %13 = vector.load %arg8[%c0, %c0_5] : memref<8x1xf32, #tpu.memory_space<vmem>>, vector<8x1xf32>
      tpu.vector_store %arg8[%c0, %c0_5], %12 {strides = array<i32>} : memref<8x1xf32, #tpu.memory_space<vmem>>, vector<8x1xf32>,
      %cst_6 = arith.constant 0.000000e+00 : f32
      %14 = vector.broadcast %cst_6 : f32 to vector<8x1xf32>
      %c0_7 = arith.constant 0 : index
      %c0_8 = arith.constant 0 : index
      %15 = vector.load %arg9[%c0_7, %c0_8] : memref<8x1xf32, #tpu.memory_space<vmem>>, vector<8x1xf32>
      tpu.vector_store %arg9[%c0_7, %c0_8], %14 {strides = array<i32>} : memref<8x1xf32, #tpu.memory_space<vmem>>, vector<8x1xf32>,
      %cst_9 = arith.constant 0.000000e+00 : f32
      %16 = vector.broadcast %cst_9 : f32 to vector<8x8xf32>
      %c0_10 = arith.constant 0 : index
      %c0_11 = arith.constant 0 : index
      %17 = vector.load %arg10[%c0_10, %c0_11] : memref<8x8xf32, #tpu.memory_space<vmem>>, vector<8x8xf32>
      tpu.vector_store %arg10[%c0_10, %c0_11], %16 {strides = array<i32>} : memref<8x8xf32, #tpu.memory_space<vmem>>, vector<8x8xf32>,
    } else {
    }
    %c8_i32 = arith.constant 8 : i32
    %3 = arith.muli %arg3, %c8_i32 : i32
    %c8_i32_1 = arith.constant 8 : i32
    %4 = arith.muli %arg2, %c8_i32_1 : i32
    %c7_i32 = arith.constant 7 : i32
    %5 = arith.addi %4, %c7_i32 : i32
    %6 = arith.cmpi sle, %3, %5 : i32
    %7 = arith.extui %6 : i1 to i32
    %c0_i32_2 = arith.constant 0 : i32
    %8 = arith.cmpi ne, %7, %c0_i32_2 : i32
    scf.if %8 {
      %c0 = arith.constant 0 : index
      %c0_5 = arith.constant 0 : index
      %c0_6 = arith.constant 0 : index
      %c0_7 = arith.constant 0 : index
      %12 = vector.load %arg4[%c0, %c0_5, %c0_6, %c0_7] : memref<1x1x8x8xbf16, #tpu.memory_space<vmem>>, vector<1x1x8x8xbf16>
      %13 = vector.shape_cast %12 : vector<1x1x8x8xbf16> to vector<8x8xbf16>
      %c0_8 = arith.constant 0 : index
      %c0_9 = arith.constant 0 : index
      %c0_10 = arith.constant 0 : index
      %c0_11 = arith.constant 0 : index
      %14 = vector.load %arg5[%c0_8, %c0_9, %c0_10, %c0_11] : memref<1x1x8x8xbf16, #tpu.memory_space<vmem>>, vector<1x1x8x8xbf16>
      %15 = vector.shape_cast %14 : vector<1x1x8x8xbf16> to vector<8x8xbf16>
      %c0_12 = arith.constant 0 : index
      %c0_13 = arith.constant 0 : index
      %c0_14 = arith.constant 0 : index
      %c0_15 = arith.constant 0 : index
      %16 = vector.load %arg6[%c0_12, %c0_13, %c0_14, %c0_15] : memref<1x1x8x8xbf16, #tpu.memory_space<vmem>>, vector<1x1x8x8xbf16>
      %17 = vector.shape_cast %16 : vector<1x1x8x8xbf16> to vector<8x8xbf16>
      %cst = arith.constant dense<0.000000e+00> : vector<8x8xf32>
      %18 = tpu.matmul %13, %15, %cst {dimension_numbers = #tpu.dot_dimension_numbers<[1], [1], [0], [0], [0, 0, 1, 0], [], []>} : vector<8x8xbf16>, vector<8x8xbf16>, vector<8x8xf32> -> vector<8x8xf32>
      %cst_16 = arith.constant 0.353553385 : f32
      %19 = vector.broadcast %cst_16 : f32 to vector<8x8xf32>
      %20 = arith.mulf %18, %19 : vector<8x8xf32>
      %c8_i32_17 = arith.constant 8 : i32
      %21 = arith.muli %arg2, %c8_i32_17 : i32
      %22 = tpu.iota {dimensions = array<i32: 0>} : vector<8x8xi32>
      %23 = vector.broadcast %21 : i32 to vector<8x8xi32>
      %24 = arith.addi %23, %22 : vector<8x8xi32>
      %c8_i32_18 = arith.constant 8 : i32
      %25 = arith.muli %arg3, %c8_i32_18 : i32
      %26 = tpu.iota {dimensions = array<i32: 1>} : vector<8x8xi32>
      %27 = vector.broadcast %25 : i32 to vector<8x8xi32>
      %28 = arith.addi %27, %26 : vector<8x8xi32>
      %29 = arith.cmpi sle, %28, %24 : vector<8x8xi32>
      %cst_19 = arith.constant -1.000000e+30 : f32
      %30 = vector.broadcast %cst_19 : f32 to vector<8x8xf32>
      %31 = arith.select %29, %20, %30 : vector<8x8xi1>, vector<8x8xf32>
      %c0_20 = arith.constant 0 : index
      %c0_21 = arith.constant 0 : index
      %32 = vector.load %arg8[%c0_20, %c0_21] : memref<8x1xf32, #tpu.memory_space<vmem>>, vector<8x1xf32>
      %cst_22 = arith.constant dense<0xFF800000> : vector<8xf32>
      %33 = vector.multi_reduction <maximumf>, %31, %cst_22 [1] : vector<8x8xf32> to vector<8xf32>
      %34 = vector.shape_cast %33 : vector<8xf32> to vector<8x1xf32>
      %35 = arith.maximumf %32, %34 : vector<8x1xf32>
      %36 = arith.subf %32, %35 : vector<8x1xf32>
      %37 = math.exp %36 : vector<8x1xf32>
      %38 = vector.broadcast %35 : vector<8x1xf32> to vector<8x8xf32>
      %39 = arith.subf %31, %38 : vector<8x8xf32>
      %40 = math.exp %39 : vector<8x8xf32>
      %c0_23 = arith.constant 0 : index
      %c0_24 = arith.constant 0 : index
      %41 = vector.load %arg9[%c0_23, %c0_24] : memref<8x1xf32, #tpu.memory_space<vmem>>, vector<8x1xf32>
      %42 = arith.mulf %37, %41 : vector<8x1xf32>
      %cst_25 = arith.constant dense<0.000000e+00> : vector<8xf32>
      %43 = vector.multi_reduction <add>, %40, %cst_25 [1] : vector<8x8xf32> to vector<8xf32>
      %44 = vector.shape_cast %43 : vector<8xf32> to vector<8x1xf32>
      %45 = arith.addf %42, %44 : vector<8x1xf32>
      %c0_26 = arith.constant 0 : index
      %c0_27 = arith.constant 0 : index
      %46 = vector.load %arg9[%c0_26, %c0_27] : memref<8x1xf32, #tpu.memory_space<vmem>>, vector<8x1xf32>
      tpu.vector_store %arg9[%c0_26, %c0_27], %45 {strides = array<i32>} : memref<8x1xf32, #tpu.memory_space<vmem>>, vector<8x1xf32>,
      %c0_28 = arith.constant 0 : index
      %c0_29 = arith.constant 0 : index
      %47 = vector.load %arg10[%c0_28, %c0_29] : memref<8x8xf32, #tpu.memory_space<vmem>>, vector<8x8xf32>
      %48 = vector.broadcast %37 : vector<8x1xf32> to vector<8x8xf32>
      %49 = arith.mulf %48, %47 : vector<8x8xf32>
      %50 = arith.truncf %40 : vector<8x8xf32> to vector<8x8xbf16>
      %cst_30 = arith.constant dense<0.000000e+00> : vector<8x8xf32>
      %51 = tpu.matmul %50, %17, %cst_30 {dimension_numbers = #tpu.dot_dimension_numbers<[1], [0], [0], [1], [0, 0, 1, 1], [], []>} : vector<8x8xbf16>, vector<8x8xbf16>, vector<8x8xf32> -> vector<8x8xf32>
      %52 = arith.addf %49, %51 : vector<8x8xf32>
      %c0_31 = arith.constant 0 : index
      %c0_32 = arith.constant 0 : index
      %53 = vector.load %arg10[%c0_31, %c0_32] : memref<8x8xf32, #tpu.memory_space<vmem>>, vector<8x8xf32>
      tpu.vector_store %arg10[%c0_31, %c0_32], %52 {strides = array<i32>} : memref<8x8xf32, #tpu.memory_space<vmem>>, vector<8x8xf32>,
      %c0_33 = arith.constant 0 : index
      %c0_34 = arith.constant 0 : index
      %54 = vector.load %arg8[%c0_33, %c0_34] : memref<8x1xf32, #tpu.memory_space<vmem>>, vector<8x1xf32>
      tpu.vector_store %arg8[%c0_33, %c0_34], %35 {strides = array<i32>} : memref<8x1xf32, #tpu.memory_space<vmem>>, vector<8x1xf32>,
    } else {
    }
    %c0_i32_3 = arith.constant 0 : i32
    %9 = arith.cmpi eq, %arg3, %c0_i32_3 : i32
    %10 = arith.extui %9 : i1 to i32
    %c0_i32_4 = arith.constant 0 : i32
    %11 = arith.cmpi ne, %10, %c0_i32_4 : i32
    scf.if %11 {
      %c0 = arith.constant 0 : index
      %c0_5 = arith.constant 0 : index
      %12 = vector.load %arg10[%c0, %c0_5] : memref<8x8xf32, #tpu.memory_space<vmem>>, vector<8x8xf32>
      %c0_6 = arith.constant 0 : index
      %c0_7 = arith.constant 0 : index
      %13 = vector.load %arg9[%c0_6, %c0_7] : memref<8x1xf32, #tpu.memory_space<vmem>>, vector<8x1xf32>
      %14 = vector.broadcast %13 : vector<8x1xf32> to vector<8x8xf32>
      %15 = arith.divf %12, %14 : vector<8x8xf32>
      %16 = arith.truncf %15 : vector<8x8xf32> to vector<8x8xbf16>
      %c0_8 = arith.constant 0 : index
      %c0_9 = arith.constant 0 : index
      %c0_10 = arith.constant 0 : index
      %c0_11 = arith.constant 0 : index
      %17 = vector.load %arg7[%c0_8, %c0_9, %c0_10, %c0_11] : memref<1x1x8x8xbf16, #tpu.memory_space<vmem>>, vector<1x1x8x8xbf16>
      %18 = vector.shape_cast %17 : vector<1x1x8x8xbf16> to vector<8x8xbf16>
      %19 = vector.shape_cast %16 : vector<8x8xbf16> to vector<1x1x8x8xbf16>
      tpu.vector_store %arg7[%c0_8, %c0_9, %c0_10, %c0_11], %19 {strides = array<i32>} : memref<1x1x8x8xbf16, #tpu.memory_space<vmem>>, vector<1x1x8x8xbf16>,
    } else {
    }
    return
  }
  func.func @transform_0(%arg0: i32, %arg1: i32, %arg2: i32, %arg3: i32) -> (i32, i32, i32, i32) {
    %c0_i32 = arith.constant 0 : i32
    %c0_i32_0 = arith.constant 0 : i32
    return %arg0, %arg1, %arg2, %c0_i32 : i32, i32, i32, i32
  }
  func.func @transform_1(%arg0: i32, %arg1: i32, %arg2: i32, %arg3: i32) -> (i32, i32, i32, i32) {
    %c0_i32 = arith.constant 0 : i32
    %c0_i32_0 = arith.constant 0 : i32
    return %arg0, %arg1, %arg3, %c0_i32 : i32, i32, i32, i32
  }
  func.func @transform_2(%arg0: i32, %arg1: i32, %arg2: i32, %arg3: i32) -> (i32, i32, i32, i32) {
    %c0_i32 = arith.constant 0 : i32
    %c0_i32_0 = arith.constant 0 : i32
    return %arg0, %arg1, %arg3, %c0_i32 : i32, i32, i32, i32
  }
  func.func @transform_3(%arg0: i32, %arg1: i32, %arg2: i32, %arg3: i32) -> (i32, i32, i32, i32) {
    %c0_i32 = arith.constant 0 : i32
    %c0_i32_0 = arith.constant 0 : i32
    return %arg0, %arg1, %arg2, %c0_i32 : i32, i32, i32, i32
  }
}

module attributes {stable_mosaic.version = 11 : i64} {
  func.func @_matmul_bias_res_kernel(%arg0: i32, %arg1: i32, %arg2: memref<16x32xbf16, #tpu.memory_space<vmem>>, %arg3: memref<32x32xbf16, #tpu.memory_space<vmem>>, %arg4: memref<1x32xf32, #tpu.memory_space<vmem>>, %arg5: memref<16x32xf32, #tpu.memory_space<vmem>>, %arg6: memref<16x32xf32, #tpu.memory_space<vmem>>) attributes {dimension_semantics = [#tpu.dimension_semantics<parallel>, #tpu.dimension_semantics<parallel>], iteration_bounds = array<i64: 1, 1>, scalar_prefetch = 0 : i64, scratch_operands = 0 : i64, tpu.core_type = #tpu.core_type<tc>, window_params = [{transform_indices = @transform_0, window_bounds = array<i64: 16, 32>}, {transform_indices = @transform_1, window_bounds = array<i64: 32, 32>}, {transform_indices = @transform_2, window_bounds = array<i64: 1, 32>}, {transform_indices = @transform_3, window_bounds = array<i64: 16, 32>}, {transform_indices = @transform_4, window_bounds = array<i64: 16, 32>}]} {
    %c0 = arith.constant 0 : index
    %c0_0 = arith.constant 0 : index
    %0 = vector.load %arg2[%c0, %c0_0] : memref<16x32xbf16, #tpu.memory_space<vmem>>, vector<16x32xbf16>
    %c0_1 = arith.constant 0 : index
    %c0_2 = arith.constant 0 : index
    %1 = vector.load %arg3[%c0_1, %c0_2] : memref<32x32xbf16, #tpu.memory_space<vmem>>, vector<32x32xbf16>
    %cst = arith.constant dense<0.000000e+00> : vector<16x32xf32>
    %2 = tpu.matmul %0, %1, %cst {dimension_numbers = #tpu.dot_dimension_numbers<[1], [0], [0], [1], [0, 0, 1, 1], [], []>} : vector<16x32xbf16>, vector<32x32xbf16>, vector<16x32xf32> -> vector<16x32xf32>
    %c0_3 = arith.constant 0 : index
    %c0_4 = arith.constant 0 : index
    %3 = vector.load %arg4[%c0_3, %c0_4] : memref<1x32xf32, #tpu.memory_space<vmem>>, vector<1x32xf32>
    %4 = vector.broadcast %3 : vector<1x32xf32> to vector<16x32xf32>
    %5 = arith.addf %2, %4 : vector<16x32xf32>
    %c0_5 = arith.constant 0 : index
    %c0_6 = arith.constant 0 : index
    %6 = vector.load %arg5[%c0_5, %c0_6] : memref<16x32xf32, #tpu.memory_space<vmem>>, vector<16x32xf32>
    %7 = arith.addf %5, %6 : vector<16x32xf32>
    %c0_7 = arith.constant 0 : index
    %c0_8 = arith.constant 0 : index
    %8 = vector.load %arg6[%c0_7, %c0_8] : memref<16x32xf32, #tpu.memory_space<vmem>>, vector<16x32xf32>
    tpu.vector_store %arg6[%c0_7, %c0_8], %7 {strides = array<i32>} : memref<16x32xf32, #tpu.memory_space<vmem>>, vector<16x32xf32>,
    return
  }
  func.func @transform_0(%arg0: i32, %arg1: i32) -> (i32, i32) {
    %c0_i32 = arith.constant 0 : i32
    %c0_i32_0 = arith.constant 0 : i32
    return %arg0, %c0_i32 : i32, i32
  }
  func.func @transform_1(%arg0: i32, %arg1: i32) -> (i32, i32) {
    %c0_i32 = arith.constant 0 : i32
    %c0_i32_0 = arith.constant 0 : i32
    return %c0_i32, %arg1 : i32, i32
  }
  func.func @transform_2(%arg0: i32, %arg1: i32) -> (i32, i32) {
    %c0_i32 = arith.constant 0 : i32
    %c0_i32_0 = arith.constant 0 : i32
    return %c0_i32, %arg1 : i32, i32
  }
  func.func @transform_3(%arg0: i32, %arg1: i32) -> (i32, i32) {
    %c0_i32 = arith.constant 0 : i32
    return %arg0, %arg1 : i32, i32
  }
  func.func @transform_4(%arg0: i32, %arg1: i32) -> (i32, i32) {
    %c0_i32 = arith.constant 0 : i32
    return %arg0, %arg1 : i32, i32
  }
}

module attributes {stable_mosaic.version = 11 : i64} {
  func.func @_ln_matmul_kernel(%arg0: i32, %arg1: i32, %arg2: memref<16x32xf32, #tpu.memory_space<vmem>>, %arg3: memref<1x32xf32, #tpu.memory_space<vmem>>, %arg4: memref<1x32xf32, #tpu.memory_space<vmem>>, %arg5: memref<32x128xbf16, #tpu.memory_space<vmem>>, %arg6: memref<1x128xf32, #tpu.memory_space<vmem>>, %arg7: memref<16x128xbf16, #tpu.memory_space<vmem>>, %arg8: memref<16x32xbf16, #tpu.memory_space<vmem>>) attributes {dimension_semantics = [#tpu.dimension_semantics<parallel>, #tpu.dimension_semantics<arbitrary>], iteration_bounds = array<i64: 1, 1>, scalar_prefetch = 0 : i64, scratch_operands = 1 : i64, tpu.core_type = #tpu.core_type<tc>, window_params = [{transform_indices = @transform_0, window_bounds = array<i64: 16, 32>}, {pipeline_mode = #tpu.pipeline_mode<synchronous>, transform_indices = @transform_1, window_bounds = array<i64: 1, 32>}, {pipeline_mode = #tpu.pipeline_mode<synchronous>, transform_indices = @transform_2, window_bounds = array<i64: 1, 32>}, {transform_indices = @transform_3, window_bounds = array<i64: 32, 128>}, {transform_indices = @transform_4, window_bounds = array<i64: 1, 128>}, {transform_indices = @transform_5, window_bounds = array<i64: 16, 128>}]} {
    %c0_i32 = arith.constant 0 : i32
    %0 = arith.cmpi eq, %arg1, %c0_i32 : i32
    %1 = arith.extui %0 : i1 to i32
    %c0_i32_0 = arith.constant 0 : i32
    %2 = arith.cmpi ne, %1, %c0_i32_0 : i32
    scf.if %2 {
      %c0_12 = arith.constant 0 : index
      %c0_13 = arith.constant 0 : index
      %24 = vector.load %arg2[%c0_12, %c0_13] : memref<16x32xf32, #tpu.memory_space<vmem>>, vector<16x32xf32>
      %cst_14 = arith.constant dense<0.000000e+00> : vector<16xf32>
      %25 = vector.multi_reduction <add>, %24, %cst_14 [1] : vector<16x32xf32> to vector<16xf32>
      %26 = vector.shape_cast %25 : vector<16xf32> to vector<16x1xf32>
      %cst_15 = arith.constant 3.200000e+01 : f32
      %27 = vector.broadcast %cst_15 : f32 to vector<16x1xf32>
      %28 = arith.divf %26, %27 : vector<16x1xf32>
      %29 = vector.broadcast %28 : vector<16x1xf32> to vector<16x32xf32>
      %30 = arith.subf %24, %29 : vector<16x32xf32>
      %31 = arith.mulf %30, %30 : vector<16x32xf32>
      %cst_16 = arith.constant dense<0.000000e+00> : vector<16xf32>
      %32 = vector.multi_reduction <add>, %31, %cst_16 [1] : vector<16x32xf32> to vector<16xf32>
      %33 = vector.shape_cast %32 : vector<16xf32> to vector<16x1xf32>
      %cst_17 = arith.constant 3.200000e+01 : f32
      %34 = vector.broadcast %cst_17 : f32 to vector<16x1xf32>
      %35 = arith.divf %33, %34 : vector<16x1xf32>
      %cst_18 = arith.constant 9.99999974E-6 : f32
      %36 = vector.broadcast %cst_18 : f32 to vector<16x1xf32>
      %37 = arith.addf %35, %36 : vector<16x1xf32>
      %38 = math.rsqrt %37 : vector<16x1xf32>
      %39 = vector.broadcast %38 : vector<16x1xf32> to vector<16x32xf32>
      %40 = arith.mulf %30, %39 : vector<16x32xf32>
      %c0_19 = arith.constant 0 : index
      %c0_20 = arith.constant 0 : index
      %41 = vector.load %arg3[%c0_19, %c0_20] : memref<1x32xf32, #tpu.memory_space<vmem>>, vector<1x32xf32>
      %42 = vector.broadcast %41 : vector<1x32xf32> to vector<16x32xf32>
      %43 = arith.mulf %40, %42 : vector<16x32xf32>
      %c0_21 = arith.constant 0 : index
      %c0_22 = arith.constant 0 : index
      %44 = vector.load %arg4[%c0_21, %c0_22] : memref<1x32xf32, #tpu.memory_space<vmem>>, vector<1x32xf32>
      %45 = vector.broadcast %44 : vector<1x32xf32> to vector<16x32xf32>
      %46 = arith.addf %43, %45 : vector<16x32xf32>
      %47 = arith.truncf %46 : vector<16x32xf32> to vector<16x32xbf16>
      %c0_23 = arith.constant 0 : index
      %c0_24 = arith.constant 0 : index
      %48 = vector.load %arg8[%c0_23, %c0_24] : memref<16x32xbf16, #tpu.memory_space<vmem>>, vector<16x32xbf16>
      tpu.vector_store %arg8[%c0_23, %c0_24], %47 {strides = array<i32>} : memref<16x32xbf16, #tpu.memory_space<vmem>>, vector<16x32xbf16>,
    } else {
    }
    %c0 = arith.constant 0 : index
    %c0_1 = arith.constant 0 : index
    %3 = vector.load %arg8[%c0, %c0_1] : memref<16x32xbf16, #tpu.memory_space<vmem>>, vector<16x32xbf16>
    %c0_2 = arith.constant 0 : index
    %c0_3 = arith.constant 0 : index
    %4 = vector.load %arg5[%c0_2, %c0_3] : memref<32x128xbf16, #tpu.memory_space<vmem>>, vector<32x128xbf16>
    %cst = arith.constant dense<0.000000e+00> : vector<16x128xf32>
    %5 = tpu.matmul %3, %4, %cst {dimension_numbers = #tpu.dot_dimension_numbers<[1], [0], [0], [1], [0, 0, 1, 1], [], []>} : vector<16x32xbf16>, vector<32x128xbf16>, vector<16x128xf32> -> vector<16x128xf32>
    %c0_4 = arith.constant 0 : index
    %c0_5 = arith.constant 0 : index
    %6 = vector.load %arg6[%c0_4, %c0_5] : memref<1x128xf32, #tpu.memory_space<vmem>>, vector<1x128xf32>
    %7 = vector.broadcast %6 : vector<1x128xf32> to vector<16x128xf32>
    %8 = arith.addf %5, %7 : vector<16x128xf32>
    %cst_6 = arith.constant 5.000000e-01 : f32
    %9 = vector.broadcast %cst_6 : f32 to vector<16x128xf32>
    %10 = arith.mulf %9, %8 : vector<16x128xf32>
    %cst_7 = arith.constant 4.471500e-02 : f32
    %11 = vector.broadcast %cst_7 : f32 to vector<16x128xf32>
    %12 = arith.mulf %11, %8 : vector<16x128xf32>
    %13 = arith.mulf %12, %8 : vector<16x128xf32>
    %14 = arith.mulf %13, %8 : vector<16x128xf32>
    %15 = arith.addf %8, %14 : vector<16x128xf32>
    %cst_8 = arith.constant 0.797884583 : f32
    %16 = vector.broadcast %cst_8 : f32 to vector<16x128xf32>
    %17 = arith.mulf %16, %15 : vector<16x128xf32>
    %18 = math.tanh %17 : vector<16x128xf32>
    %cst_9 = arith.constant 1.000000e+00 : f32
    %19 = vector.broadcast %cst_9 : f32 to vector<16x128xf32>
    %20 = arith.addf %19, %18 : vector<16x128xf32>
    %21 = arith.mulf %10, %20 : vector<16x128xf32>
    %22 = arith.truncf %21 : vector<16x128xf32> to vector<16x128xbf16>
    %c0_10 = arith.constant 0 : index
    %c0_11 = arith.constant 0 : index
    %23 = vector.load %arg7[%c0_10, %c0_11] : memref<16x128xbf16, #tpu.memory_space<vmem>>, vector<16x128xbf16>
    tpu.vector_store %arg7[%c0_10, %c0_11], %22 {strides = array<i32>} : memref<16x128xbf16, #tpu.memory_space<vmem>>, vector<16x128xbf16>,
    return
  }
  func.func @transform_0(%arg0: i32, %arg1: i32) -> (i32, i32) {
    %c0_i32 = arith.constant 0 : i32
    %c0_i32_0 = arith.constant 0 : i32
    return %arg0, %c0_i32 : i32, i32
  }
  func.func @transform_1(%arg0: i32, %arg1: i32) -> (i32, i32) {
    %c0_i32 = arith.constant 0 : i32
    %c0_i32_0 = arith.constant 0 : i32
    %c0_i32_1 = arith.constant 0 : i32
    return %c0_i32, %c0_i32_0 : i32, i32
  }
  func.func @transform_2(%arg0: i32, %arg1: i32) -> (i32, i32) {
    %c0_i32 = arith.constant 0 : i32
    %c0_i32_0 = arith.constant 0 : i32
    %c0_i32_1 = arith.constant 0 : i32
    return %c0_i32, %c0_i32_0 : i32, i32
  }
  func.func @transform_3(%arg0: i32, %arg1: i32) -> (i32, i32) {
    %c0_i32 = arith.constant 0 : i32
    %c0_i32_0 = arith.constant 0 : i32
    return %c0_i32, %arg1 : i32, i32
  }
  func.func @transform_4(%arg0: i32, %arg1: i32) -> (i32, i32) {
    %c0_i32 = arith.constant 0 : i32
    %c0_i32_0 = arith.constant 0 : i32
    return %c0_i32, %arg1 : i32, i32
  }
  func.func @transform_5(%arg0: i32, %arg1: i32) -> (i32, i32) {
    %c0_i32 = arith.constant 0 : i32
    return %arg0, %arg1 : i32, i32
  }
}

module attributes {stable_mosaic.version = 11 : i64} {
  func.func @_matmul_bias_res_kernel(%arg0: i32, %arg1: i32, %arg2: memref<16x128xbf16, #tpu.memory_space<vmem>>, %arg3: memref<128x32xbf16, #tpu.memory_space<vmem>>, %arg4: memref<1x32xf32, #tpu.memory_space<vmem>>, %arg5: memref<16x32xf32, #tpu.memory_space<vmem>>, %arg6: memref<16x32xf32, #tpu.memory_space<vmem>>) attributes {dimension_semantics = [#tpu.dimension_semantics<parallel>, #tpu.dimension_semantics<parallel>], iteration_bounds = array<i64: 1, 1>, scalar_prefetch = 0 : i64, scratch_operands = 0 : i64, tpu.core_type = #tpu.core_type<tc>, window_params = [{transform_indices = @transform_0, window_bounds = array<i64: 16, 128>}, {transform_indices = @transform_1, window_bounds = array<i64: 128, 32>}, {transform_indices = @transform_2, window_bounds = array<i64: 1, 32>}, {transform_indices = @transform_3, window_bounds = array<i64: 16, 32>}, {transform_indices = @transform_4, window_bounds = array<i64: 16, 32>}]} {
    %c0 = arith.constant 0 : index
    %c0_0 = arith.constant 0 : index
    %0 = vector.load %arg2[%c0, %c0_0] : memref<16x128xbf16, #tpu.memory_space<vmem>>, vector<16x128xbf16>
    %c0_1 = arith.constant 0 : index
    %c0_2 = arith.constant 0 : index
    %1 = vector.load %arg3[%c0_1, %c0_2] : memref<128x32xbf16, #tpu.memory_space<vmem>>, vector<128x32xbf16>
    %cst = arith.constant dense<0.000000e+00> : vector<16x32xf32>
    %2 = tpu.matmul %0, %1, %cst {dimension_numbers = #tpu.dot_dimension_numbers<[1], [0], [0], [1], [0, 0, 1, 1], [], []>} : vector<16x128xbf16>, vector<128x32xbf16>, vector<16x32xf32> -> vector<16x32xf32>
    %c0_3 = arith.constant 0 : index
    %c0_4 = arith.constant 0 : index
    %3 = vector.load %arg4[%c0_3, %c0_4] : memref<1x32xf32, #tpu.memory_space<vmem>>, vector<1x32xf32>
    %4 = vector.broadcast %3 : vector<1x32xf32> to vector<16x32xf32>
    %5 = arith.addf %2, %4 : vector<16x32xf32>
    %c0_5 = arith.constant 0 : index
    %c0_6 = arith.constant 0 : index
    %6 = vector.load %arg5[%c0_5, %c0_6] : memref<16x32xf32, #tpu.memory_space<vmem>>, vector<16x32xf32>
    %7 = arith.addf %5, %6 : vector<16x32xf32>
    %c0_7 = arith.constant 0 : index
    %c0_8 = arith.constant 0 : index
    %8 = vector.load %arg6[%c0_7, %c0_8] : memref<16x32xf32, #tpu.memory_space<vmem>>, vector<16x32xf32>
    tpu.vector_store %arg6[%c0_7, %c0_8], %7 {strides = array<i32>} : memref<16x32xf32, #tpu.memory_space<vmem>>, vector<16x32xf32>,
    return
  }
  func.func @transform_0(%arg0: i32, %arg1: i32) -> (i32, i32) {
    %c0_i32 = arith.constant 0 : i32
    %c0_i32_0 = arith.constant 0 : i32
    return %arg0, %c0_i32 : i32, i32
  }
  func.func @transform_1(%arg0: i32, %arg1: i32) -> (i32, i32) {
    %c0_i32 = arith.constant 0 : i32
    %c0_i32_0 = arith.constant 0 : i32
    return %c0_i32, %arg1 : i32, i32
  }
  func.func @transform_2(%arg0: i32, %arg1: i32) -> (i32, i32) {
    %c0_i32 = arith.constant 0 : i32
    %c0_i32_0 = arith.constant 0 : i32
    return %c0_i32, %arg1 : i32, i32
  }
  func.func @transform_3(%arg0: i32, %arg1: i32) -> (i32, i32) {
    %c0_i32 = arith.constant 0 : i32
    return %arg0, %arg1 : i32, i32
  }
  func.func @transform_4(%arg0: i32, %arg1: i32) -> (i32, i32) {
    %c0_i32 = arith.constant 0 : i32
    return %arg0, %arg1 : i32, i32
  }
}

module attributes {stable_mosaic.version = 11 : i64} {
  func.func @_ln_lmhead_kernel(%arg0: i32, %arg1: i32, %arg2: memref<16x32xf32, #tpu.memory_space<vmem>>, %arg3: memref<1x32xf32, #tpu.memory_space<vmem>>, %arg4: memref<1x32xf32, #tpu.memory_space<vmem>>, %arg5: memref<64x32xbf16, #tpu.memory_space<vmem>>, %arg6: memref<16x64xf32, #tpu.memory_space<vmem>>, %arg7: memref<16x32xbf16, #tpu.memory_space<vmem>>) attributes {dimension_semantics = [#tpu.dimension_semantics<parallel>, #tpu.dimension_semantics<arbitrary>], iteration_bounds = array<i64: 1, 1>, scalar_prefetch = 0 : i64, scratch_operands = 1 : i64, tpu.core_type = #tpu.core_type<tc>, window_params = [{transform_indices = @transform_0, window_bounds = array<i64: 16, 32>}, {pipeline_mode = #tpu.pipeline_mode<synchronous>, transform_indices = @transform_1, window_bounds = array<i64: 1, 32>}, {pipeline_mode = #tpu.pipeline_mode<synchronous>, transform_indices = @transform_2, window_bounds = array<i64: 1, 32>}, {transform_indices = @transform_3, window_bounds = array<i64: 64, 32>}, {transform_indices = @transform_4, window_bounds = array<i64: 16, 64>}]} {
    %c0_i32 = arith.constant 0 : i32
    %0 = arith.cmpi eq, %arg1, %c0_i32 : i32
    %1 = arith.extui %0 : i1 to i32
    %c0_i32_0 = arith.constant 0 : i32
    %2 = arith.cmpi ne, %1, %c0_i32_0 : i32
    scf.if %2 {
      %c0_6 = arith.constant 0 : index
      %c0_7 = arith.constant 0 : index
      %7 = vector.load %arg2[%c0_6, %c0_7] : memref<16x32xf32, #tpu.memory_space<vmem>>, vector<16x32xf32>
      %cst_8 = arith.constant dense<0.000000e+00> : vector<16xf32>
      %8 = vector.multi_reduction <add>, %7, %cst_8 [1] : vector<16x32xf32> to vector<16xf32>
      %9 = vector.shape_cast %8 : vector<16xf32> to vector<16x1xf32>
      %cst_9 = arith.constant 3.200000e+01 : f32
      %10 = vector.broadcast %cst_9 : f32 to vector<16x1xf32>
      %11 = arith.divf %9, %10 : vector<16x1xf32>
      %12 = vector.broadcast %11 : vector<16x1xf32> to vector<16x32xf32>
      %13 = arith.subf %7, %12 : vector<16x32xf32>
      %14 = arith.mulf %13, %13 : vector<16x32xf32>
      %cst_10 = arith.constant dense<0.000000e+00> : vector<16xf32>
      %15 = vector.multi_reduction <add>, %14, %cst_10 [1] : vector<16x32xf32> to vector<16xf32>
      %16 = vector.shape_cast %15 : vector<16xf32> to vector<16x1xf32>
      %cst_11 = arith.constant 3.200000e+01 : f32
      %17 = vector.broadcast %cst_11 : f32 to vector<16x1xf32>
      %18 = arith.divf %16, %17 : vector<16x1xf32>
      %cst_12 = arith.constant 9.99999974E-6 : f32
      %19 = vector.broadcast %cst_12 : f32 to vector<16x1xf32>
      %20 = arith.addf %18, %19 : vector<16x1xf32>
      %21 = math.rsqrt %20 : vector<16x1xf32>
      %22 = vector.broadcast %21 : vector<16x1xf32> to vector<16x32xf32>
      %23 = arith.mulf %13, %22 : vector<16x32xf32>
      %c0_13 = arith.constant 0 : index
      %c0_14 = arith.constant 0 : index
      %24 = vector.load %arg3[%c0_13, %c0_14] : memref<1x32xf32, #tpu.memory_space<vmem>>, vector<1x32xf32>
      %25 = vector.broadcast %24 : vector<1x32xf32> to vector<16x32xf32>
      %26 = arith.mulf %23, %25 : vector<16x32xf32>
      %c0_15 = arith.constant 0 : index
      %c0_16 = arith.constant 0 : index
      %27 = vector.load %arg4[%c0_15, %c0_16] : memref<1x32xf32, #tpu.memory_space<vmem>>, vector<1x32xf32>
      %28 = vector.broadcast %27 : vector<1x32xf32> to vector<16x32xf32>
      %29 = arith.addf %26, %28 : vector<16x32xf32>
      %30 = arith.truncf %29 : vector<16x32xf32> to vector<16x32xbf16>
      %c0_17 = arith.constant 0 : index
      %c0_18 = arith.constant 0 : index
      %31 = vector.load %arg7[%c0_17, %c0_18] : memref<16x32xbf16, #tpu.memory_space<vmem>>, vector<16x32xbf16>
      tpu.vector_store %arg7[%c0_17, %c0_18], %30 {strides = array<i32>} : memref<16x32xbf16, #tpu.memory_space<vmem>>, vector<16x32xbf16>,
    } else {
    }
    %c0 = arith.constant 0 : index
    %c0_1 = arith.constant 0 : index
    %3 = vector.load %arg7[%c0, %c0_1] : memref<16x32xbf16, #tpu.memory_space<vmem>>, vector<16x32xbf16>
    %c0_2 = arith.constant 0 : index
    %c0_3 = arith.constant 0 : index
    %4 = vector.load %arg5[%c0_2, %c0_3] : memref<64x32xbf16, #tpu.memory_space<vmem>>, vector<64x32xbf16>
    %cst = arith.constant dense<0.000000e+00> : vector<16x64xf32>
    %5 = tpu.matmul %3, %4, %cst {dimension_numbers = #tpu.dot_dimension_numbers<[1], [1], [0], [0], [0, 0, 1, 0], [], []>} : vector<16x32xbf16>, vector<64x32xbf16>, vector<16x64xf32> -> vector<16x64xf32>
    %c0_4 = arith.constant 0 : index
    %c0_5 = arith.constant 0 : index
    %6 = vector.load %arg6[%c0_4, %c0_5] : memref<16x64xf32, #tpu.memory_space<vmem>>, vector<16x64xf32>
    tpu.vector_store %arg6[%c0_4, %c0_5], %5 {strides = array<i32>} : memref<16x64xf32, #tpu.memory_space<vmem>>, vector<16x64xf32>,
    return
  }
  func.func @transform_0(%arg0: i32, %arg1: i32) -> (i32, i32) {
    %c0_i32 = arith.constant 0 : i32
    %c0_i32_0 = arith.constant 0 : i32
    return %arg0, %c0_i32 : i32, i32
  }
  func.func @transform_1(%arg0: i32, %arg1: i32) -> (i32, i32) {
    %c0_i32 = arith.constant 0 : i32
    %c0_i32_0 = arith.constant 0 : i32
    %c0_i32_1 = arith.constant 0 : i32
    return %c0_i32, %c0_i32_0 : i32, i32
  }
  func.func @transform_2(%arg0: i32, %arg1: i32) -> (i32, i32) {
    %c0_i32 = arith.constant 0 : i32
    %c0_i32_0 = arith.constant 0 : i32
    %c0_i32_1 = arith.constant 0 : i32
    return %c0_i32, %c0_i32_0 : i32, i32
  }
  func.func @transform_3(%arg0: i32, %arg1: i32) -> (i32, i32) {
    %c0_i32 = arith.constant 0 : i32
    %c0_i32_0 = arith.constant 0 : i32
    return %arg1, %c0_i32 : i32, i32
  }
  func.func @transform_4(%arg0: i32, %arg1: i32) -> (i32, i32) {
    %c0_i32 = arith.constant 0 : i32
    return %arg0, %arg1 : i32, i32
  }
}

</mosaic_0001>

<llo_original>
// kernel: gpt2_logits.11
$region0: #{gpt2_logits.11}
  #allocation0 [shape = 'u32[]', space=smem, size = 0x4, offset = 0x4, fixed_abs, tag = 'smem constant byte address 0x4 - core index']
  #allocation1 [shape = 'u32[144,128]{1,0:T(1,128)}', space=vmem, size = 0x12000, scoped, tag = 'internal scratch']
  #allocation2 [shape = 'bf16[16,32]{1,0:T(16,128)(2,1)}', space=vmem, size = 0x1000, scoped, tag = 'scratch operand']
  %s0 = inlined_call_operand.vmem [shape: f32[16,32], index: 0, kind: input, shape index: {}]
  %s1 = inlined_call_operand.vmem [shape: f32[1,32], index: 1, kind: input, shape index: {}]
  %s2 = inlined_call_operand.vmem [shape: f32[1,32], index: 2, kind: input, shape index: {}]
  %s3 = inlined_call_operand.vmem [shape: bf16[32,96], index: 3, kind: input, shape index: {}]
  %s4 = inlined_call_operand.vmem [shape: f32[1,96], index: 4, kind: input, shape index: {}]
  %s5 = inlined_call_operand.vmem [shape: bf16[16,96], index: 5, kind: output, shape index: {}]
  %s6 = sld [smem:[#allocation0]]
  $region34: #{gpt2_logits.11} parent=0
    _
  %s8 = ssub.s32 1, %s6
  %s9 = scalar_select 0, %s8, %s6
  // Predicated region
  $region2: #{gpt2_logits.11} parent=0 // pred_check
    _
  $region3: #{gpt2_logits.11} parent=0 // pred_check_branch
    %11 = sbr.rel (0) target = $region5
  $region4: #{gpt2_logits.11} parent=0 // pred_region
    _
  $region5: #{gpt2_logits.11} parent=0 // pred_fallthru
    _
  // Predicated region
  $region6: #{gpt2_logits.11} parent=0 // pred_check
    _
  $region7: #{gpt2_logits.11} parent=0 // pred_check_branch
    %13 = sbr.rel (0) target = $region9
  $region8: #{gpt2_logits.11} parent=0 // pred_region
    _
  $region9: #{gpt2_logits.11} parent=0 // pred_fallthru
    _
  // Predicated region
  $region10: #{gpt2_logits.11} parent=0 // pred_check
    _
  $region11: #{gpt2_logits.11} parent=0 // pred_check_branch
    %15 = sbr.rel (0) target = $region13
  $region12: #{gpt2_logits.11} parent=0 // pred_region
    _
  $region13: #{gpt2_logits.11} parent=0 // pred_fallthru
    _
  // Predicated region
  $region14: #{gpt2_logits.11} parent=0 // pred_check
    _
  $region15: #{gpt2_logits.11} parent=0 // pred_check_branch
    %17 = sbr.rel (0) target = $region17
  $region16: #{gpt2_logits.11} parent=0 // pred_region
    _
  $region17: #{gpt2_logits.11} parent=0 // pred_fallthru
    _
  // Predicated region
  $region18: #{gpt2_logits.11} parent=0 // pred_check
    _
  $region19: #{gpt2_logits.11} parent=0 // pred_check_branch
    %19 = sbr.rel (0) target = $region21
  $region20: #{gpt2_logits.11} parent=0 // pred_region
    _
  $region21: #{gpt2_logits.11} parent=0 // pred_fallthru
    _
  %p21 = scmp.eq.s32.totalorder 0, 0
  // Predicated region
  $region22: #{gpt2_logits.11} parent=0 // pred_check
    %p22 = pneg %p21
  $region23: #{gpt2_logits.11} parent=0 // pred_check_branch
    %24 = sbr.rel (%p22) target = $region25
  $region24: #{gpt2_logits.11} parent=0 // pred_region
    %v25 = vld [vmem:[%s0] sm:$0xff]
    %v26 = vld [vmem:[%s0 + $0x8] sm:$0xff]
    %vm27 = vcmask 261120
    %v28 = vsel %vm27, %v25, 0.0
    %29 = vadd.xlane.f32.xlu0 %v28
    %v30 = vpop.xlane.xlu0 %29
    %v31 = vsel %vm27, %v26, 0.0
    %32 = vadd.xlane.f32.xlu0 %v31
    %v33 = vpop.xlane.xlu0 %32
    %v34 = vrcp.pop 32.0
    %v35 = vmul.f32 %v30, %v34
    %v36 = vmul.f32 %v33, %v34
    %v37 = vsub.f32 %v25, %v35
    %v38 = vsub.f32 %v26, %v36
    %v39 = vmul.f32 %v37, %v37
    %v40 = vmul.f32 %v38, %v38
    %v41 = vsel %vm27, %v39, 0.0
    %42 = vadd.xlane.f32.xlu0 %v41
    %v43 = vpop.xlane.xlu0 %42
    %v44 = vsel %vm27, %v40, 0.0
    %45 = vadd.xlane.f32.xlu0 %v44
    %v46 = vpop.xlane.xlu0 %45
    %v47 = vmul.f32 %v43, %v34
    %v48 = vmul.f32 %v46, %v34
    %v49 = vadd.f32 %v47, 1e-05
    %v50 = vadd.f32 %v48, 1e-05
    %v51 = vrsqrt.pop %v49
    %v52 = vrsqrt.pop %v50
    %v53 = vmul.f32 %v37, %v51
    %v54 = vmul.f32 %v38, %v52
    %v55 = vld [vmem:[%s1] sm:$0x1]
    %v57 = vlaneseq
    %v58 = vshrl.u32 %v57, 7
    %v59 = vsub.s32 0, %v58
    %v60 = vrot.slane %v55, %v59
    %v62 = vmul.f32 %v53, %v60
    %v63 = vmul.f32 %v54, %v60
    %v64 = vld [vmem:[%s2] sm:$0x1]
    %v66 = vlaneseq
    %v67 = vshrl.u32 %v66, 7
    %v68 = vsub.s32 0, %v67
    %v69 = vrot.slane %v64, %v68
    %v71 = vadd.f32 %v62, %v69
    %v72 = vadd.f32 %v63, %v69
    %v73 = vpack.c.bf16 %v72, %v71
    %74 = vst.msk [vmem:[#allocation2] sm:$0xff] %vm27, %v73
  $region25: #{gpt2_logits.11} parent=0 // pred_fallthru
    _
  %v75 = vld [vmem:[#allocation2] sm:$0xff]
  %v76 = vld [vmem:[%s3] sm:$0xf]
  %v77 = vld [vmem:[%s3 + $0x4] sm:$0xf]
  %v78 = vld [vmem:[%s3 + $0x8] sm:$0xf]
  %v79 = vld [vmem:[%s3 + $0xc] sm:$0xf]
  %v80 = vld [vmem:[%s4] sm:$0x1]
  %v82 = vlaneseq
  %v83 = vshrl.u32 %v82, 7
  %v84 = vsub.s32 0, %v83
  %v85 = vrot.slane %v80, %v84
  %v91 = vunpack.c.l.b16 %v76
  %v92 = vunpack.c.l.b16 %v77
  %v93 = vunpack.c.l.b16 %v78
  %v94 = vunpack.c.l.b16 %v79
  %v95 = vpack.c.b16 %v92, %v91
  %v96 = vpack.c.b16 %v94, %v93
  %vm99 = vcmask 261120
  %v101 = vsel %vm99, %v75, 0
  %103 = vmatprep.subr.bf16.mxu0 0
  %104 = vmatpush1.bf16.msra.mxu0 %v95
  %105 = vmatprep.subr.bf16.mxu0 0
  %106 = vmatpush1.bf16.msra.mxu0 %v96
  %107 = vmatprep.subr.bf16.mxu0 0
  %108 = vmatpush1.bf16.msra.mxu0 0
  %109 = vmatprep.subr.bf16.mxu0 0
  %110 = vmatpush1.bf16.msra.mxu0 0
  %111 = vmatprep.subr.bf16.mxu0 0
  %112 = vmatpush1.bf16.msra.mxu0 0
  %113 = vmatprep.subr.bf16.mxu0 0
  %114 = vmatpush1.bf16.msra.mxu0 0
  %115 = vmatprep.subr.bf16.mxu0 0
  %116 = vmatpush1.bf16.msra.mxu0 0
  %117 = vmatprep.subr.bf16.mxu0 0
  %118 = vmatpush1.bf16.msra.mxu0 0
  %119 = vmatprep.subr.bf16.mxu0 0
  %120 = vmatpush1.bf16.msra.mxu0 0
  %121 = vmatprep.subr.bf16.mxu0 0
  %122 = vmatpush1.bf16.msra.mxu0 0
  %123 = vmatprep.subr.bf16.mxu0 0
  %124 = vmatpush1.bf16.msra.mxu0 0
  %125 = vmatprep.subr.bf16.mxu0 0
  %126 = vmatpush1.bf16.msra.mxu0 0
  %127 = vmatprep.subr.bf16.mxu0 0
  %128 = vmatpush1.bf16.msra.mxu0 0
  %129 = vmatprep.subr.bf16.mxu0 0
  %130 = vmatpush1.bf16.msra.mxu0 0
  %131 = vmatprep.subr.bf16.mxu0 0
  %132 = vmatpush1.bf16.msra.mxu0 0
  %133 = vmatprep.subr.bf16.mxu0 0
  %134 = vmatpush1.bf16.msra.mxu0 0
  %135 = vmatprep.mubr.bf16.mxu0 0
  %136 = vmatmul.mubr.bf16.gmra.mrb[0].mxu0 %v101
  %v137 = vpop.f32.mrb[0].mxu0
  %v138 = vadd.f32 %v85, %v137
  %v139 = vpop.f32.mrb[0].mxu0
  %v140 = vpop.f32.mrb[0].mxu0
  %v141 = vadd.f32 %v85, %v140
  %v142 = vpop.f32.mrb[0].mxu0
  %143 = vdwg.mxu0
  %v144 = vpack.c.bf16 %v141, %v138
  %v146 = vunpack.c.l.b16 %v144
  %v147 = vunpack.c.h.b16 %v144
  %v148 = vpack.c.b16 %v146, %v146
  %v149 = vpack.c.b16 %v147, %v147
  %vm152 = vcmask 781312
  %153 = vst.msk [vmem:[%s5] sm:$0xf] %vm152, %v148
  %154 = vst.msk [vmem:[%s5 + $0x4] sm:$0xf] %vm152, %v149
  // Predicated region
  $region26: #{gpt2_logits.11} parent=0 // pred_check
    _
  $region27: #{gpt2_logits.11} parent=0 // pred_check_branch
    %156 = sbr.rel (0) target = $region29
  $region28: #{gpt2_logits.11} parent=0 // pred_region
    _
  $region29: #{gpt2_logits.11} parent=0 // pred_fallthru
    _
  // Predicated region
  $region30: #{gpt2_logits.11} parent=0 // pred_check
    _
  $region31: #{gpt2_logits.11} parent=0 // pred_check_branch
    %158 = sbr.rel (0) target = $region33
  $region32: #{gpt2_logits.11} parent=0 // pred_region
    _
  $region33: #{gpt2_logits.11} parent=0 // pred_fallthru
    _

// kernel: gpt2_logits.12
$region0: #{gpt2_logits.12}
  #allocation0 [shape = 'u32[]', space=smem, size = 0x4, offset = 0x4, fixed_abs, tag = 'smem constant byte address 0x4 - core index']
  #allocation1 [shape = 'u32[144,128]{1,0:T(1,128)}', space=vmem, size = 0x12000, scoped, tag = 'internal scratch']
  #allocation2 [shape = 'f32[8,1]{1,0:T(8,128)}', space=vmem, size = 0x1000, scoped, tag = 'scratch operand']
  #allocation3 [shape = 'f32[8,1]{1,0:T(8,128)}', space=vmem, size = 0x1000, scoped, tag = 'scratch operand']
  #allocation4 [shape = 'f32[8,8]{1,0:T(8,128)}', space=vmem, size = 0x1000, scoped, tag = 'scratch operand']
  %s0 = inlined_call_operand.vmem [shape: bf16[2,4,8,8], index: 0, kind: input, shape index: {}]
  %s1 = inlined_call_operand.vmem [shape: bf16[2,4,8,8], index: 1, kind: input, shape index: {}]
  %s2 = inlined_call_operand.vmem [shape: bf16[2,4,8,8], index: 2, kind: input, shape index: {}]
  %s3 = inlined_call_operand.vmem [shape: bf16[2,4,8,8], index: 3, kind: output, shape index: {}]
  %s4 = sld [smem:[#allocation0]]
  $region57: #{gpt2_logits.12} parent=0
    _
  %s6 = ssub.s32 1, %s4
  %s7 = scalar_select 0, %s6, %s4
  loop: start=0, step=1, limit=10
  $region2: #{gpt2_logits.12} parent=0 // loop_pre_header
    _
  $region3: #{gpt2_logits.12} parent=0 // loop_header
    %s9 = sphi 0, %s13
    %p10 = scmp.ge.s32.totalorder %s9, 10
    %s16 = sphi 0, %s42
    %s17 = sphi 0, %s38
    %s18 = sphi 0, %s34
    %s19 = sphi 0, %s30
    %s20 = sphi 0, %s16
    %s21 = sphi 0, %s17
    %s22 = sphi 0, %s18
    %s23 = sphi 0, %s19
    %s24 = sphi 0, %s20
    %s25 = sphi 0, %s21
    %s26 = sphi 0, %s22
    %s27 = sphi 0, %s23
    %s49 = sphi 0, %s51
    %s52 = sphi 0, %s49
    %s53 = sphi 0, %s52
    %s69 = sphi 0, %s53
    %s79 = sphi 0, %s81
    %s82 = sphi 0, %s79
    %s83 = sphi 0, %s82
    %s99 = sphi 0, %s83
    %s109 = sphi 0, %s111
    %s112 = sphi 0, %s109
    %s113 = sphi 0, %s112
    %s129 = sphi 0, %s113
    %s139 = sphi 0, %s141
    %s142 = sphi 0, %s139
    %s143 = sphi 0, %s142
    %s159 = sphi 0, %s143
  $region4: #{gpt2_logits.12} parent=0 // loop_header_branch
    %12 = sbr.rel (%p10) target = $region8
  $region5: #{gpt2_logits.12} parent=0 // loop_body
    %s14 = ssub.s32 %s9, 1
    %s15 = ssub.s32 %s9, 2
    %s28 = sadd.s32 1, %s19
    %p29 = scmp.ge.s32.totalorder %s28, 1
    %s30 = scalar_select %p29, 0, %s28
    %s31 = sadd.s32 1, %s18
    %s32 = scalar_select %p29, %s31, %s18
    %p33 = scmp.ge.s32.totalorder %s32, 1
    %s34 = scalar_select %p33, 0, %s32
    %s35 = sadd.s32 1, %s17
    %s36 = scalar_select %p33, %s35, %s17
    %p37 = scmp.ge.s32.totalorder %s36, 4
    %s38 = scalar_select %p37, 0, %s36
    %s39 = sadd.s32 1, %s16
    %s40 = scalar_select %p37, %s39, %s16
    %p41 = scmp.ge.s32.totalorder %s40, 2
    %s42 = scalar_select %p41, 0, %s40
    %s43 = ssub.s32 %s16, %s42
    %s44 = ssub.s32 %s17, %s38
    %s45 = sor.u32 %s43, %s44
    %s46 = ssub.s32 %s18, %s34
    %s47 = sor.u32 %s45, %s46
    %p48 = scmp.eq.s32.totalorder %s47, 0
    %s50 = sadd.s32 %s49, 1
    %s51 = scalar_select %p48, %s49, %s50
    %p54 = pneg %p48
    %p55 = scmp.eq.s32.totalorder %s9, 7
    %p56 = por %p54, %p55
    %p57 = scmp.ne.s32.totalorder %s49, %s52
    %p58 = scmp.eq.s32.totalorder %s9, 0
    %p59 = por %p57, %p58
    %p60 = scmp.ne.s32.totalorder %s49, %s52
    %p61 = scmp.eq.s32.totalorder %s14, 7
    %p62 = por %p60, %p61
    %p63 = scmp.ne.s32.totalorder %s52, %s53
    %p64 = scmp.eq.s32.totalorder %s14, 0
    %p65 = por %p63, %p64
    %p66 = scmp.ne.s32.totalorder %s52, %s53
    %p67 = scmp.eq.s32.totalorder %s15, 7
    %p68 = por %p66, %p67
    %p70 = scmp.ne.s32.totalorder %s53, %s69
    %p71 = scmp.eq.s32.totalorder %s15, 0
    %p72 = por %p70, %p71
    %s73 = ssub.s32 %s16, %s42
    %s74 = ssub.s32 %s17, %s38
    %s75 = sor.u32 %s73, %s74
    %s76 = ssub.s32 %s19, %s30
    %s77 = sor.u32 %s75, %s76
    %p78 = scmp.eq.s32.totalorder %s77, 0
    %s80 = sadd.s32 %s79, 1
    %s81 = scalar_select %p78, %s79, %s80
    %p84 = pneg %p78
    %p85 = scmp.eq.s32.totalorder %s9, 7
    %p86 = por %p84, %p85
    %p87 = scmp.ne.s32.totalorder %s79, %s82
    %p88 = scmp.eq.s32.totalorder %s9, 0
    %p89 = por %p87, %p88
    %p90 = scmp.ne.s32.totalorder %s79, %s82
    %p91 = scmp.eq.s32.totalorder %s14, 7
    %p92 = por %p90, %p91
    %p93 = scmp.ne.s32.totalorder %s82, %s83
    %p94 = scmp.eq.s32.totalorder %s14, 0
    %p95 = por %p93, %p94
    %p96 = scmp.ne.s32.totalorder %s82, %s83
    %p97 = scmp.eq.s32.totalorder %s15, 7
    %p98 = por %p96, %p97
    %p100 = scmp.ne.s32.totalorder %s83, %s99
    %p101 = scmp.eq.s32.totalorder %s15, 0
    %p102 = por %p100, %p101
    %s103 = ssub.s32 %s16, %s42
    %s104 = ssub.s32 %s17, %s38
    %s105 = sor.u32 %s103, %s104
    %s106 = ssub.s32 %s19, %s30
    %s107 = sor.u32 %s105, %s106
    %p108 = scmp.eq.s32.totalorder %s107, 0
    %s110 = sadd.s32 %s109, 1
    %s111 = scalar_select %p108, %s109, %s110
    %p114 = pneg %p108
    %p115 = scmp.eq.s32.totalorder %s9, 7
    %p116 = por %p114, %p115
    %p117 = scmp.ne.s32.totalorder %s109, %s112
    %p118 = scmp.eq.s32.totalorder %s9, 0
    %p119 = por %p117, %p118
    %p120 = scmp.ne.s32.totalorder %s109, %s112
    %p121 = scmp.eq.s32.totalorder %s14, 7
    %p122 = por %p120, %p121
    %p123 = scmp.ne.s32.totalorder %s112, %s113
    %p124 = scmp.eq.s32.totalorder %s14, 0
    %p125 = por %p123, %p124
    %p126 = scmp.ne.s32.totalorder %s112, %s113
    %p127 = scmp.eq.s32.totalorder %s15, 7
    %p128 = por %p126, %p127
    %p130 = scmp.ne.s32.totalorder %s113, %s129
    %p131 = scmp.eq.s32.totalorder %s15, 0
    %p132 = por %p130, %p131
    %s133 = ssub.s32 %s16, %s42
    %s134 = ssub.s32 %s17, %s38
    %s135 = sor.u32 %s133, %s134
    %s136 = ssub.s32 %s18, %s34
    %s137 = sor.u32 %s135, %s136
    %p138 = scmp.eq.s32.totalorder %s137, 0
    %s140 = sadd.s32 %s139, 1
    %s141 = scalar_select %p138, %s139, %s140
    %p144 = pneg %p138
    %p145 = scmp.eq.s32.totalorder %s9, 7
    %p146 = por %p144, %p145
    %p147 = scmp.ne.s32.totalorder %s139, %s142
    %p148 = scmp.eq.s32.totalorder %s9, 0
    %p149 = por %p147, %p148
    %p150 = scmp.ne.s32.totalorder %s139, %s142
    %p151 = scmp.eq.s32.totalorder %s14, 7
    %p152 = por %p150, %p151
    %p153 = scmp.ne.s32.totalorder %s142, %s143
    %p154 = scmp.eq.s32.totalorder %s14, 0
    %p155 = por %p153, %p154
    %p156 = scmp.ne.s32.totalorder %s142, %s143
    %p157 = scmp.eq.s32.totalorder %s15, 7
    %p158 = por %p156, %p157
    %p160 = scmp.ne.s32.totalorder %s143, %s159
    %p161 = scmp.eq.s32.totalorder %s15, 0
    %p162 = por %p160, %p161
    %p163 = scmp.le.s32.totalorder 1, %s9
    %p164 = scmp.lt.s32.totalorder %s9, 9
    %p165 = pnand %p163, %p164
    %p166 = pneg %p165
    // Predicated region
    $region9: #{gpt2_logits.12} parent=5 // pred_check
      _
    $region10: #{gpt2_logits.12} parent=5 // pred_check_branch
      %168 = sbr.rel (%p165) target = $region12
    $region11: #{gpt2_logits.12} parent=5 // pred_region
      %s169 = ssub.s32 %s9, 1
    $region12: #{gpt2_logits.12} parent=5 // pred_fallthru
      _
    %p170 = scmp.lt.s32.totalorder %s9, 8
    // Predicated region
    $region13: #{gpt2_logits.12} parent=5 // pred_check
      %p171 = pneg %p170
    $region14: #{gpt2_logits.12} parent=5 // pred_check_branch
      %173 = sbr.rel (%p171) target = $region16
    $region15: #{gpt2_logits.12} parent=5 // pred_region
      // Predicated region
      $region17: #{gpt2_logits.12} parent=15 // pred_check
        %p174 = pneg %p59
      $region18: #{gpt2_logits.12} parent=15 // pred_check_branch
        %176 = sbr.rel (%p174) target = $region20
      $region19: #{gpt2_logits.12} parent=15 // pred_region
        %p177 = scmp.lt.s32.totalorder %s16, 1
        %s178 = scalar_select %p177, %s16, 1
        %p179 = scmp.lt.s32.totalorder %s17, 3
        %s180 = scalar_select %p179, %s17, 3
        %p181 = scmp.lt.s32.totalorder %s18, 0
        %s182 = scalar_select %p181, %s18, 0
        %s183 = sadd.s32 %s182, %s180
        %s184 = smul.addr %s178, 4
        %s185 = sadd.s32 %s183, %s184
        %s186 = smul.addr %s185, 4
        %s187 = scalar_lea.vmem %s0, %s186
      $region20: #{gpt2_logits.12} parent=15 // pred_fallthru
        _
      // Predicated region
      $region21: #{gpt2_logits.12} parent=15 // pred_check
        %p188 = pneg %p89
      $region22: #{gpt2_logits.12} parent=15 // pred_check_branch
        %190 = sbr.rel (%p188) target = $region24
      $region23: #{gpt2_logits.12} parent=15 // pred_region
        %p191 = scmp.lt.s32.totalorder %s16, 1
        %s192 = scalar_select %p191, %s16, 1
        %p193 = scmp.lt.s32.totalorder %s17, 3
        %s194 = scalar_select %p193, %s17, 3
        %p195 = scmp.lt.s32.totalorder %s19, 0
        %s196 = scalar_select %p195, %s19, 0
        %s197 = sadd.s32 %s196, %s194
        %s198 = smul.addr %s192, 4
        %s199 = sadd.s32 %s197, %s198
        %s200 = smul.addr %s199, 4
        %s201 = scalar_lea.vmem %s1, %s200
      $region24: #{gpt2_logits.12} parent=15 // pred_fallthru
        _
      // Predicated region
      $region25: #{gpt2_logits.12} parent=15 // pred_check
        %p202 = pneg %p119
      $region26: #{gpt2_logits.12} parent=15 // pred_check_branch
        %204 = sbr.rel (%p202) target = $region28
      $region27: #{gpt2_logits.12} parent=15 // pred_region
        %p205 = scmp.lt.s32.totalorder %s16, 1
        %s206 = scalar_select %p205, %s16, 1
        %p207 = scmp.lt.s32.totalorder %s17, 3
        %s208 = scalar_select %p207, %s17, 3
        %p209 = scmp.lt.s32.totalorder %s19, 0
        %s210 = scalar_select %p209, %s19, 0
        %s211 = sadd.s32 %s210, %s208
        %s212 = smul.addr %s206, 4
        %s213 = sadd.s32 %s211, %s212
        %s214 = smul.addr %s213, 4
        %s215 = scalar_lea.vmem %s2, %s214
      $region28: #{gpt2_logits.12} parent=15 // pred_fallthru
        _
    $region16: #{gpt2_logits.12} parent=5 // pred_fallthru
      _
    %p216 = scmp.le.s32.totalorder 1, %s9
    %p217 = scmp.lt.s32.totalorder %s9, 9
    %p218 = pnand %p216, %p217
    %p219 = pneg %p218
    // Predicated region
    $region29: #{gpt2_logits.12} parent=5 // pred_check
      _
    $region30: #{gpt2_logits.12} parent=5 // pred_check_branch
      %221 = sbr.rel (%p218) target = $region32
    $region31: #{gpt2_logits.12} parent=5 // pred_region
      %s222 = ssub.s32 %s9, 1
      %p223 = scmp.lt.s32.totalorder %s20, 1
      %s224 = scalar_select %p223, %s20, 1
      %p225 = scmp.lt.s32.totalorder %s21, 3
      %s226 = scalar_select %p225, %s21, 3
      %p227 = scmp.lt.s32.totalorder %s22, 0
      %s228 = scalar_select %p227, %s22, 0
      %s229 = sadd.s32 %s228, %s226
      %s230 = smul.addr %s224, 4
      %s231 = sadd.s32 %s229, %s230
      %s232 = smul.addr %s231, 4
      %s233 = scalar_lea.vmem %s0, %s232
      %p234 = pneg %p65
      %p235 = pneg %p62
      %p236 = scmp.lt.s32.totalorder %s20, 1
      %s237 = scalar_select %p236, %s20, 1
      %p238 = scmp.lt.s32.totalorder %s21, 3
      %s239 = scalar_select %p238, %s21, 3
      %p240 = scmp.lt.s32.totalorder %s23, 0
      %s241 = scalar_select %p240, %s23, 0
      %s242 = sadd.s32 %s241, %s239
      %s243 = smul.addr %s237, 4
      %s244 = sadd.s32 %s242, %s243
      %s245 = smul.addr %s244, 4
      %s246 = scalar_lea.vmem %s1, %s245
      %p247 = pneg %p95
      %p248 = pneg %p92
      %p249 = scmp.lt.s32.totalorder %s20, 1
      %s250 = scalar_select %p249, %s20, 1
      %p251 = scmp.lt.s32.totalorder %s21, 3
      %s252 = scalar_select %p251, %s21, 3
      %p253 = scmp.lt.s32.totalorder %s23, 0
      %s254 = scalar_select %p253, %s23, 0
      %s255 = sadd.s32 %s254, %s252
      %s256 = smul.addr %s250, 4
      %s257 = sadd.s32 %s255, %s256
      %s258 = smul.addr %s257, 4
      %s259 = scalar_lea.vmem %s2, %s258
      %p260 = pneg %p125
      %p261 = pneg %p122
      %p262 = pneg %p155
      %p263 = pneg %p152
      %p264 = scmp.lt.s32.totalorder %s20, 1
      %s265 = scalar_select %p264, %s20, 1
      %p266 = scmp.lt.s32.totalorder %s21, 3
      %s267 = scalar_select %p266, %s21, 3
      %p268 = scmp.lt.s32.totalorder %s22, 0
      %s269 = scalar_select %p268, %s22, 0
      %s270 = sadd.s32 %s269, %s267
      %s271 = smul.addr %s265, 4
      %s272 = sadd.s32 %s270, %s271
      %s273 = smul.addr %s272, 4
      %s274 = scalar_lea.vmem %s3, %s273
      %p275 = scmp.lt.s32.totalorder %s20, 1
      %s276 = scalar_select %p275, %s20, 1
      %p277 = scmp.lt.s32.totalorder %s21, 3
      %s278 = scalar_select %p277, %s21, 3
      %p279 = scmp.lt.s32.totalorder %s22, 0
      %s280 = scalar_select %p279, %s22, 0
      %s281 = sadd.s32 %s280, %s278
      %s282 = smul.addr %s276, 4
      %s283 = sadd.s32 %s281, %s282
      %s284 = smul.addr %s283, 4
      %s285 = scalar_lea.vmem %s0, %s284
      %p286 = scmp.lt.s32.totalorder %s20, 1
      %s287 = scalar_select %p286, %s20, 1
      %p288 = scmp.lt.s32.totalorder %s21, 3
      %s289 = scalar_select %p288, %s21, 3
      %p290 = scmp.lt.s32.totalorder %s23, 0
      %s291 = scalar_select %p290, %s23, 0
      %s292 = sadd.s32 %s291, %s289
      %s293 = smul.addr %s287, 4
      %s294 = sadd.s32 %s292, %s293
      %s295 = smul.addr %s294, 4
      %s296 = scalar_lea.vmem %s1, %s295
      %p297 = scmp.lt.s32.totalorder %s20, 1
      %s298 = scalar_select %p297, %s20, 1
      %p299 = scmp.lt.s32.totalorder %s21, 3
      %s300 = scalar_select %p299, %s21, 3
      %p301 = scmp.lt.s32.totalorder %s23, 0
      %s302 = scalar_select %p301, %s23, 0
      %s303 = sadd.s32 %s302, %s300
      %s304 = smul.addr %s298, 4
      %s305 = sadd.s32 %s303, %s304
      %s306 = smul.addr %s305, 4
      %s307 = scalar_lea.vmem %s2, %s306
      %p308 = scmp.lt.s32.totalorder %s20, 1
      %s309 = scalar_select %p308, %s20, 1
      %p310 = scmp.lt.s32.totalorder %s21, 3
      %s311 = scalar_select %p310, %s21, 3
      %p312 = scmp.lt.s32.totalorder %s22, 0
      %s313 = scalar_select %p312, %s22, 0
      %s314 = sadd.s32 %s313, %s311
      %s315 = smul.addr %s309, 4
      %s316 = sadd.s32 %s314, %s315
      %s317 = smul.addr %s316, 4
      %s318 = scalar_lea.vmem %s3, %s317
      %p320 = scmp.eq.s32.totalorder %s23, 0
      // Predicated region
      $region33: #{gpt2_logits.12} parent=31 // pred_check
        %p321 = pneg %p320
      $region34: #{gpt2_logits.12} parent=31 // pred_check_branch
        %323 = sbr.rel (%p321) target = $region36
      $region35: #{gpt2_logits.12} parent=31 // pred_region
        %vm324 = vcmask 7168
        %325 = vst.msk [vmem:[#allocation2] sm:$0xff] %vm324, -inf
        %326 = vst.msk [vmem:[#allocation3] sm:$0xff] %vm324, 0.0
        %vm327 = vcmask 64512
        %328 = vst.msk [vmem:[#allocation4] sm:$0xff] %vm327, 0.0
      $region36: #{gpt2_logits.12} parent=31 // pred_fallthru
        _
      %s329 = smul.u32 %s23, 8
      %s330 = smul.u32 %s22, 8
      %s331 = sadd.s32 %s330, 7
      %p332 = scmp.le.s32.totalorder %s329, %s331
      // Predicated region
      $region37: #{gpt2_logits.12} parent=31 // pred_check
        %p333 = pneg %p332
      $region38: #{gpt2_logits.12} parent=31 // pred_check_branch
        %335 = sbr.rel (%p333) target = $region40
      $region39: #{gpt2_logits.12} parent=31 // pred_region
        %v336 = vld [vmem:[%s285] sm:$0xf]
        %v337 = vld [vmem:[%s296] sm:$0xf]
        %v338 = vld [vmem:[%s307] sm:$0xf]
        %vm339 = vcmask 64512
        %v341 = vsel %vm339, %v336, 0
        %v344 = vsel %vm339, %v337, 0
        %346 = vmatprep.subr.bf16.mxu0 0
        %347 = vmatpush1.bf16.xpose.msra.mxu0 %v344
        %348 = vmatprep.subr.bf16.mxu0 0
        %349 = vmatpush1.bf16.xpose.msra.mxu0 0
        %350 = vmatprep.subr.bf16.mxu0 0
        %351 = vmatpush1.bf16.xpose.msra.mxu0 0
        %352 = vmatprep.subr.bf16.mxu0 0
        %353 = vmatpush1.bf16.xpose.msra.mxu0 0
        %354 = vmatprep.subr.bf16.mxu0 0
        %355 = vmatpush1.bf16.xpose.msra.mxu0 0
        %356 = vmatprep.subr.bf16.mxu0 0
        %357 = vmatpush1.bf16.xpose.msra.mxu0 0
        %358 = vmatprep.subr.bf16.mxu0 0
        %359 = vmatpush1.bf16.xpose.msra.mxu0 0
        %360 = vmatprep.subr.bf16.mxu0 0
        %361 = vmatpush1.bf16.xpose.msra.mxu0 0
        %362 = vmatprep.subr.bf16.mxu0 0
        %363 = vmatpush1.bf16.xpose.msra.mxu0 0
        %364 = vmatprep.subr.bf16.mxu0 0
        %365 = vmatpush1.bf16.xpose.msra.mxu0 0
        %366 = vmatprep.subr.bf16.mxu0 0
        %367 = vmatpush1.bf16.xpose.msra.mxu0 0
        %368 = vmatprep.subr.bf16.mxu0 0
        %369 = vmatpush1.bf16.xpose.msra.mxu0 0
        %370 = vmatprep.subr.bf16.mxu0 0
        %371 = vmatpush1.bf16.xpose.msra.mxu0 0
        %372 = vmatprep.subr.bf16.mxu0 0
        %373 = vmatpush1.bf16.xpose.msra.mxu0 0
        %374 = vmatprep.subr.bf16.mxu0 0
        %375 = vmatpush1.bf16.xpose.msra.mxu0 0
        %376 = vmatprep.subr.bf16.mxu0 0
        %377 = vmatpush1.bf16.xpose.msra.mxu0 0
        %378 = vmatprep.mubr.bf16.mxu0 0
        %379 = vmatmul.mubr.bf16.gmra.mrb[0].mxu0 %v341
        %v380 = vpop.f32.mrb[0].mxu0
        %v381 = vadd.f32 0.0, %v380
        %v382 = vpop.f32.mrb[0].mxu0
        %v383 = vpop.f32.mrb[0].mxu0
        %v384 = vpop.f32.mrb[0].mxu0
        %385 = vdwg.mxu0
        %v386 = vmul.f32 %v381, 0.35355338
        %v387 = vlaneseq
        %v388 = vshrl.u32 %v387, 7
        %v389 = vstv %s330
        %v390 = vadd.s32 %v389, %v388
        %v391 = vlaneseq
        %v392 = vand.u32 %v391, 127
        %v393 = vstv %s329
        %v394 = vadd.s32 %v393, %v392
        %vm395 = vcmp.le.s32.totalorder %v394, %v390
        %v396 = vsel %vm395, %v386, -1e+30
        %v397 = vld [vmem:[#allocation2] sm:$0xff]
        %v398 = vsel %vm339, %v396, -inf
        %399 = vmax.xlane.f32.xlu0 %v398
        %v400 = vpop.xlane.xlu0 %399
        %v401 = vmax.f32 %v397, %v400
        %v402 = vsub.f32 %v397, %v401
        %v403 = vmul.f32 %v402, 1.442695
        %v404 = vpow.pop %v403
        %406 = vset.pattern.permute.xlu0 0
        %407 = vperm.xlu0 %406, %v401
        %v408 = vpop.permute.xlu0 %407
        %v410 = vsub.f32 %v396, %v408
        %v411 = vmul.f32 %v410, 1.442695
        %v412 = vpow.pop %v411
        %v413 = vld [vmem:[#allocation3] sm:$0xff]
        %v414 = vmul.f32 %v404, %v413
        %v415 = vsel %vm339, %v412, 0.0
        %416 = vadd.xlane.f32.xlu0 %v415
        %v417 = vpop.xlane.xlu0 %416
        %v418 = vadd.f32 %v414, %v417
        %vm419 = vcmask 7168
        %420 = vst.msk [vmem:[#allocation3] sm:$0xff] %vm419, %v418
        %v421 = vld [vmem:[#allocation4] sm:$0xff]
        %423 = vset.pattern.permute.xlu0 0
        %424 = vperm.xlu0 %423, %v404
        %v425 = vpop.permute.xlu0 %424
        %v427 = vmul.f32 %v425, %v421
        %v428 = vpack.c.bf16 %v412, %v412
        %v430 = vsel %vm339, %v428, 0
        %vm432 = vcmask 1043456
        %v434 = vsel %vm432, %v338, 0
        %436 = vmatprep.subr.bf16.mxu0 0
        %437 = vmatpush1.bf16.msra.mxu0 %v434
        %438 = vmatprep.subr.bf16.mxu0 0
        %439 = vmatpush1.bf16.msra.mxu0 0
        %440 = vmatprep.subr.bf16.mxu0 0
        %441 = vmatpush1.bf16.msra.mxu0 0
        %442 = vmatprep.subr.bf16.mxu0 0
        %443 = vmatpush1.bf16.msra.mxu0 0
        %444 = vmatprep.subr.bf16.mxu0 0
        %445 = vmatpush1.bf16.msra.mxu0 0
        %446 = vmatprep.subr.bf16.mxu0 0
        %447 = vmatpush1.bf16.msra.mxu0 0
        %448 = vmatprep.subr.bf16.mxu0 0
        %449 = vmatpush1.bf16.msra.mxu0 0
        %450 = vmatprep.subr.bf16.mxu0 0
        %451 = vmatpush1.bf16.msra.mxu0 0
        %452 = vmatprep.subr.bf16.mxu0 0
        %453 = vmatpush1.bf16.msra.mxu0 0
        %454 = vmatprep.subr.bf16.mxu0 0
        %455 = vmatpush1.bf16.msra.mxu0 0
        %456 = vmatprep.subr.bf16.mxu0 0
        %457 = vmatpush1.bf16.msra.mxu0 0
        %458 = vmatprep.subr.bf16.mxu0 0
        %459 = vmatpush1.bf16.msra.mxu0 0
        %460 = vmatprep.subr.bf16.mxu0 0
        %461 = vmatpush1.bf16.msra.mxu0 0
        %462 = vmatprep.subr.bf16.mxu0 0
        %463 = vmatpush1.bf16.msra.mxu0 0
        %464 = vmatprep.subr.bf16.mxu0 0
        %465 = vmatpush1.bf16.msra.mxu0 0
        %466 = vmatprep.subr.bf16.mxu0 0
        %467 = vmatpush1.bf16.msra.mxu0 0
        %468 = vmatprep.mubr.bf16.mxu0 0
        %469 = vmatmul.mubr.bf16.gmra.mrb[0].mxu0 %v430
        %v470 = vpop.f32.mrb[0].mxu0
        %v471 = vadd.f32 0.0, %v470
        %v472 = vpop.f32.mrb[0].mxu0
        %v473 = vpop.f32.mrb[0].mxu0
        %v474 = vpop.f32.mrb[0].mxu0
        %475 = vdwg.mxu0
        %v476 = vadd.f32 %v427, %v471
        %477 = vst.msk [vmem:[#allocation4] sm:$0xff] %vm339, %v476
        %478 = vst.msk [vmem:[#allocation2] sm:$0xff] %vm419, %v401
      $region40: #{gpt2_logits.12} parent=31 // pred_fallthru
        _
      // Predicated region
      $region41: #{gpt2_logits.12} parent=31 // pred_check
        %p479 = pneg %p320
      $region42: #{gpt2_logits.12} parent=31 // pred_check_branch
        %481 = sbr.rel (%p479) target = $region44
      $region43: #{gpt2_logits.12} parent=31 // pred_region
        %v482 = vld [vmem:[#allocation4] sm:$0xff]
        %v483 = vld [vmem:[#allocation3] sm:$0xff]
        %485 = vset.pattern.permute.xlu0 0
        %486 = vperm.xlu0 %485, %v483
        %v487 = vpop.permute.xlu0 %486
        %v489 = vrcp.pop %v487
        %v490 = vmul.f32 %v482, %v489
        %v491 = vpack.c.bf16 %v490, %v490
        %vm492 = vcmask 60416
        %493 = vst.msk [vmem:[%s318] sm:$0xf] %vm492, %v491
      $region44: #{gpt2_logits.12} parent=31 // pred_fallthru
        _
      %p494 = scmp.lt.s32.totalorder %s20, 1
      %s495 = scalar_select %p494, %s20, 1
      %p496 = scmp.lt.s32.totalorder %s21, 3
      %s497 = scalar_select %p496, %s21, 3
      %p498 = scmp.lt.s32.totalorder %s22, 0
      %s499 = scalar_select %p498, %s22, 0
      %s500 = sadd.s32 %s499, %s497
      %s501 = smul.addr %s495, 4
      %s502 = sadd.s32 %s500, %s501
      %s503 = smul.addr %s502, 4
      %s504 = scalar_lea.vmem %s3, %s503
      // Predicated region
      $region45: #{gpt2_logits.12} parent=31 // pred_check
        %p505 = pneg %p152
      $region46: #{gpt2_logits.12} parent=31 // pred_check_branch
        %507 = sbr.rel (%p505) target = $region48
      $region47: #{gpt2_logits.12} parent=31 // pred_region
        _
      $region48: #{gpt2_logits.12} parent=31 // pred_fallthru
        _
    $region32: #{gpt2_logits.12} parent=5 // pred_fallthru
      _
    %p508 = scmp.le.s32.totalorder 2, %s9
    // Predicated region
    $region49: #{gpt2_logits.12} parent=5 // pred_check
      %p509 = pneg %p508
    $region50: #{gpt2_logits.12} parent=5 // pred_check_branch
      %511 = sbr.rel (%p509) target = $region52
    $region51: #{gpt2_logits.12} parent=5 // pred_region
      %s512 = ssub.s32 %s9, 2
      // Predicated region
      $region53: #{gpt2_logits.12} parent=51 // pred_check
        %p513 = pneg %p158
      $region54: #{gpt2_logits.12} parent=51 // pred_check_branch
        %515 = sbr.rel (%p513) target = $region56
      $region55: #{gpt2_logits.12} parent=51 // pred_region
        %p516 = scmp.lt.s32.totalorder %s24, 1
        %s517 = scalar_select %p516, %s24, 1
        %p518 = scmp.lt.s32.totalorder %s25, 3
        %s519 = scalar_select %p518, %s25, 3
        %p520 = scmp.lt.s32.totalorder %s26, 0
        %s521 = scalar_select %p520, %s26, 0
        %s522 = sadd.s32 %s521, %s519
        %s523 = smul.addr %s517, 4
        %s524 = sadd.s32 %s522, %s523
        %s525 = smul.addr %s524, 4
        %s526 = scalar_lea.vmem %s3, %s525
      $region56: #{gpt2_logits.12} parent=51 // pred_fallthru
        _
    $region52: #{gpt2_logits.12} parent=5 // pred_fallthru
      _
  $region6: #{gpt2_logits.12} parent=0 // loop_footer
    %s13 = sadd.s32 1, %s9
  $region7: #{gpt2_logits.12} parent=0 // loop_footer_branch
    %8 = sbr.rel target = $region3
  $region8: #{gpt2_logits.12} parent=0 // loop_exit
    _

// kernel: gpt2_logits.13
$region0: #{gpt2_logits.13}
  #allocation0 [shape = 'u32[]', space=smem, size = 0x4, offset = 0x4, fixed_abs, tag = 'smem constant byte address 0x4 - core index']
  #allocation1 [shape = 'u32[144,128]{1,0:T(1,128)}', space=vmem, size = 0x12000, scoped, tag = 'internal scratch']
  %s0 = inlined_call_operand.vmem [shape: bf16[16,32], index: 0, kind: input, shape index: {}]
  %s1 = inlined_call_operand.vmem [shape: bf16[32,32], index: 1, kind: input, shape index: {}]
  %s2 = inlined_call_operand.vmem [shape: f32[1,32], index: 2, kind: input, shape index: {}]
  %s3 = inlined_call_operand.vmem [shape: f32[16,32], index: 3, kind: input, shape index: {}]
  %s4 = inlined_call_operand.vmem [shape: f32[16,32], index: 4, kind: output, shape index: {}]
  %s5 = sld [smem:[#allocation0]]
  $region26: #{gpt2_logits.13} parent=0
    _
  %s7 = ssub.s32 1, %s5
  %s8 = scalar_select 0, %s7, %s5
  // Predicated region
  $region2: #{gpt2_logits.13} parent=0 // pred_check
    _
  $region3: #{gpt2_logits.13} parent=0 // pred_check_branch
    %10 = sbr.rel (0) target = $region5
  $region4: #{gpt2_logits.13} parent=0 // pred_region
    _
  $region5: #{gpt2_logits.13} parent=0 // pred_fallthru
    _
  // Predicated region
  $region6: #{gpt2_logits.13} parent=0 // pred_check
    _
  $region7: #{gpt2_logits.13} parent=0 // pred_check_branch
    %12 = sbr.rel (0) target = $region9
  $region8: #{gpt2_logits.13} parent=0 // pred_region
    _
  $region9: #{gpt2_logits.13} parent=0 // pred_fallthru
    _
  // Predicated region
  $region10: #{gpt2_logits.13} parent=0 // pred_check
    _
  $region11: #{gpt2_logits.13} parent=0 // pred_check_branch
    %14 = sbr.rel (0) target = $region13
  $region12: #{gpt2_logits.13} parent=0 // pred_region
    _
  $region13: #{gpt2_logits.13} parent=0 // pred_fallthru
    _
  // Predicated region
  $region14: #{gpt2_logits.13} parent=0 // pred_check
    _
  $region15: #{gpt2_logits.13} parent=0 // pred_check_branch
    %16 = sbr.rel (0) target = $region17
  $region16: #{gpt2_logits.13} parent=0 // pred_region
    _
  $region17: #{gpt2_logits.13} parent=0 // pred_fallthru
    _
  %v18 = vld [vmem:[%s0] sm:$0xf]
  %v19 = vld [vmem:[%s0 + $0x4] sm:$0xf]
  %v20 = vld [vmem:[%s1] sm:$0xf]
  %v21 = vld [vmem:[%s1 + $0x4] sm:$0xf]
  %v22 = vld [vmem:[%s1 + $0x8] sm:$0xf]
  %v23 = vld [vmem:[%s1 + $0xc] sm:$0xf]
  %v24 = vld [vmem:[%s2] sm:$0x1]
  %v26 = vlaneseq
  %v27 = vshrl.u32 %v26, 7
  %v28 = vsub.s32 0, %v27
  %v29 = vrot.slane %v24, %v28
  %v33 = vunpack.c.l.b16 %v18
  %v34 = vunpack.c.l.b16 %v19
  %v35 = vpack.c.b16 %v34, %v33
  %v40 = vunpack.c.l.b16 %v20
  %v41 = vunpack.c.l.b16 %v21
  %v42 = vunpack.c.l.b16 %v22
  %v43 = vunpack.c.l.b16 %v23
  %v44 = vpack.c.b16 %v41, %v40
  %v45 = vpack.c.b16 %v43, %v42
  %vm48 = vcmask 261120
  %v50 = vsel %vm48, %v35, 0
  %52 = vmatprep.subr.bf16.mxu0 0
  %53 = vmatpush1.bf16.msra.mxu0 %v44
  %54 = vmatprep.subr.bf16.mxu0 0
  %55 = vmatpush1.bf16.msra.mxu0 %v45
  %56 = vmatprep.subr.bf16.mxu0 0
  %57 = vmatpush1.bf16.msra.mxu0 0
  %58 = vmatprep.subr.bf16.mxu0 0
  %59 = vmatpush1.bf16.msra.mxu0 0
  %60 = vmatprep.subr.bf16.mxu0 0
  %61 = vmatpush1.bf16.msra.mxu0 0
  %62 = vmatprep.subr.bf16.mxu0 0
  %63 = vmatpush1.bf16.msra.mxu0 0
  %64 = vmatprep.subr.bf16.mxu0 0
  %65 = vmatpush1.bf16.msra.mxu0 0
  %66 = vmatprep.subr.bf16.mxu0 0
  %67 = vmatpush1.bf16.msra.mxu0 0
  %68 = vmatprep.subr.bf16.mxu0 0
  %69 = vmatpush1.bf16.msra.mxu0 0
  %70 = vmatprep.subr.bf16.mxu0 0
  %71 = vmatpush1.bf16.msra.mxu0 0
  %72 = vmatprep.subr.bf16.mxu0 0
  %73 = vmatpush1.bf16.msra.mxu0 0
  %74 = vmatprep.subr.bf16.mxu0 0
  %75 = vmatpush1.bf16.msra.mxu0 0
  %76 = vmatprep.subr.bf16.mxu0 0
  %77 = vmatpush1.bf16.msra.mxu0 0
  %78 = vmatprep.subr.bf16.mxu0 0
  %79 = vmatpush1.bf16.msra.mxu0 0
  %80 = vmatprep.subr.bf16.mxu0 0
  %81 = vmatpush1.bf16.msra.mxu0 0
  %82 = vmatprep.subr.bf16.mxu0 0
  %83 = vmatpush1.bf16.msra.mxu0 0
  %84 = vmatprep.mubr.bf16.mxu0 0
  %85 = vmatmul.mubr.bf16.gmra.mrb[0].mxu0 %v50
  %v86 = vpop.f32.mrb[0].mxu0
  %v87 = vadd.f32 %v29, %v86
  %v88 = vpop.f32.mrb[0].mxu0
  %v89 = vpop.f32.mrb[0].mxu0
  %v90 = vadd.f32 %v29, %v89
  %v91 = vpop.f32.mrb[0].mxu0
  %92 = vdwg.mxu0
  %v93 = vld [vmem:[%s3] sm:$0xff]
  %v94 = vld [vmem:[%s3 + $0x8] sm:$0xff]
  %v95 = vadd.f32 %v87, %v93
  %v96 = vadd.f32 %v90, %v94
  %97 = vst.msk [vmem:[%s4] sm:$0xff] %vm48, %v95
  %98 = vst.msk [vmem:[%s4 + $0x8] sm:$0xff] %vm48, %v96
  // Predicated region
  $region18: #{gpt2_logits.13} parent=0 // pred_check
    _
  $region19: #{gpt2_logits.13} parent=0 // pred_check_branch
    %100 = sbr.rel (0) target = $region21
  $region20: #{gpt2_logits.13} parent=0 // pred_region
    _
  $region21: #{gpt2_logits.13} parent=0 // pred_fallthru
    _
  // Predicated region
  $region22: #{gpt2_logits.13} parent=0 // pred_check
    _
  $region23: #{gpt2_logits.13} parent=0 // pred_check_branch
    %102 = sbr.rel (0) target = $region25
  $region24: #{gpt2_logits.13} parent=0 // pred_region
    _
  $region25: #{gpt2_logits.13} parent=0 // pred_fallthru
    _

// kernel: gpt2_logits.14
$region0: #{gpt2_logits.14}
  #allocation0 [shape = 'u32[]', space=smem, size = 0x4, offset = 0x4, fixed_abs, tag = 'smem constant byte address 0x4 - core index']
  #allocation1 [shape = 'u32[144,128]{1,0:T(1,128)}', space=vmem, size = 0x12000, scoped, tag = 'internal scratch']
  #allocation2 [shape = 'bf16[16,32]{1,0:T(16,128)(2,1)}', space=vmem, size = 0x1000, scoped, tag = 'scratch operand']
  %s0 = inlined_call_operand.vmem [shape: f32[16,32], index: 0, kind: input, shape index: {}]
  %s1 = inlined_call_operand.vmem [shape: f32[1,32], index: 1, kind: input, shape index: {}]
  %s2 = inlined_call_operand.vmem [shape: f32[1,32], index: 2, kind: input, shape index: {}]
  %s3 = inlined_call_operand.vmem [shape: bf16[32,128], index: 3, kind: input, shape index: {}]
  %s4 = inlined_call_operand.vmem [shape: f32[1,128], index: 4, kind: input, shape index: {}]
  %s5 = inlined_call_operand.vmem [shape: bf16[16,128], index: 5, kind: output, shape index: {}]
  %s6 = sld [smem:[#allocation0]]
  $region34: #{gpt2_logits.14} parent=0
    _
  %s8 = ssub.s32 1, %s6
  %s9 = scalar_select 0, %s8, %s6
  // Predicated region
  $region2: #{gpt2_logits.14} parent=0 // pred_check
    _
  $region3: #{gpt2_logits.14} parent=0 // pred_check_branch
    %11 = sbr.rel (0) target = $region5
  $region4: #{gpt2_logits.14} parent=0 // pred_region
    _
  $region5: #{gpt2_logits.14} parent=0 // pred_fallthru
    _
  // Predicated region
  $region6: #{gpt2_logits.14} parent=0 // pred_check
    _
  $region7: #{gpt2_logits.14} parent=0 // pred_check_branch
    %13 = sbr.rel (0) target = $region9
  $region8: #{gpt2_logits.14} parent=0 // pred_region
    _
  $region9: #{gpt2_logits.14} parent=0 // pred_fallthru
    _
  // Predicated region
  $region10: #{gpt2_logits.14} parent=0 // pred_check
    _
  $region11: #{gpt2_logits.14} parent=0 // pred_check_branch
    %15 = sbr.rel (0) target = $region13
  $region12: #{gpt2_logits.14} parent=0 // pred_region
    _
  $region13: #{gpt2_logits.14} parent=0 // pred_fallthru
    _
  // Predicated region
  $region14: #{gpt2_logits.14} parent=0 // pred_check
    _
  $region15: #{gpt2_logits.14} parent=0 // pred_check_branch
    %17 = sbr.rel (0) target = $region17
  $region16: #{gpt2_logits.14} parent=0 // pred_region
    _
  $region17: #{gpt2_logits.14} parent=0 // pred_fallthru
    _
  // Predicated region
  $region18: #{gpt2_logits.14} parent=0 // pred_check
    _
  $region19: #{gpt2_logits.14} parent=0 // pred_check_branch
    %19 = sbr.rel (0) target = $region21
  $region20: #{gpt2_logits.14} parent=0 // pred_region
    _
  $region21: #{gpt2_logits.14} parent=0 // pred_fallthru
    _
  %p21 = scmp.eq.s32.totalorder 0, 0
  // Predicated region
  $region22: #{gpt2_logits.14} parent=0 // pred_check
    %p22 = pneg %p21
  $region23: #{gpt2_logits.14} parent=0 // pred_check_branch
    %24 = sbr.rel (%p22) target = $region25
  $region24: #{gpt2_logits.14} parent=0 // pred_region
    %v25 = vld [vmem:[%s0] sm:$0xff]
    %v26 = vld [vmem:[%s0 + $0x8] sm:$0xff]
    %vm27 = vcmask 261120
    %v28 = vsel %vm27, %v25, 0.0
    %29 = vadd.xlane.f32.xlu0 %v28
    %v30 = vpop.xlane.xlu0 %29
    %v31 = vsel %vm27, %v26, 0.0
    %32 = vadd.xlane.f32.xlu0 %v31
    %v33 = vpop.xlane.xlu0 %32
    %v34 = vrcp.pop 32.0
    %v35 = vmul.f32 %v30, %v34
    %v36 = vmul.f32 %v33, %v34
    %v37 = vsub.f32 %v25, %v35
    %v38 = vsub.f32 %v26, %v36
    %v39 = vmul.f32 %v37, %v37
    %v40 = vmul.f32 %v38, %v38
    %v41 = vsel %vm27, %v39, 0.0
    %42 = vadd.xlane.f32.xlu0 %v41
    %v43 = vpop.xlane.xlu0 %42
    %v44 = vsel %vm27, %v40, 0.0
    %45 = vadd.xlane.f32.xlu0 %v44
    %v46 = vpop.xlane.xlu0 %45
    %v47 = vmul.f32 %v43, %v34
    %v48 = vmul.f32 %v46, %v34
    %v49 = vadd.f32 %v47, 1e-05
    %v50 = vadd.f32 %v48, 1e-05
    %v51 = vrsqrt.pop %v49
    %v52 = vrsqrt.pop %v50
    %v53 = vmul.f32 %v37, %v51
    %v54 = vmul.f32 %v38, %v52
    %v55 = vld [vmem:[%s1] sm:$0x1]
    %v57 = vlaneseq
    %v58 = vshrl.u32 %v57, 7
    %v59 = vsub.s32 0, %v58
    %v60 = vrot.slane %v55, %v59
    %v62 = vmul.f32 %v53, %v60
    %v63 = vmul.f32 %v54, %v60
    %v64 = vld [vmem:[%s2] sm:$0x1]
    %v66 = vlaneseq
    %v67 = vshrl.u32 %v66, 7
    %v68 = vsub.s32 0, %v67
    %v69 = vrot.slane %v64, %v68
    %v71 = vadd.f32 %v62, %v69
    %v72 = vadd.f32 %v63, %v69
    %v73 = vpack.c.bf16 %v72, %v71
    %74 = vst.msk [vmem:[#allocation2] sm:$0xff] %vm27, %v73
  $region25: #{gpt2_logits.14} parent=0 // pred_fallthru
    _
  %v75 = vld [vmem:[#allocation2] sm:$0xff]
  %v76 = vld [vmem:[%s3] sm:$0xf]
  %v77 = vld [vmem:[%s3 + $0x4] sm:$0xf]
  %v78 = vld [vmem:[%s3 + $0x8] sm:$0xf]
  %v79 = vld [vmem:[%s3 + $0xc] sm:$0xf]
  %v80 = vld [vmem:[%s4] sm:$0x1]
  %v82 = vlaneseq
  %v83 = vshrl.u32 %v82, 7
  %v84 = vsub.s32 0, %v83
  %v85 = vrot.slane %v80, %v84
  %v91 = vunpack.c.l.b16 %v76
  %v92 = vunpack.c.l.b16 %v77
  %v93 = vunpack.c.l.b16 %v78
  %v94 = vunpack.c.l.b16 %v79
  %v95 = vpack.c.b16 %v92, %v91
  %v96 = vpack.c.b16 %v94, %v93
  %vm99 = vcmask 261120
  %v101 = vsel %vm99, %v75, 0
  %103 = vmatprep.subr.bf16.mxu0 0
  %104 = vmatpush1.bf16.msra.mxu0 %v95
  %105 = vmatprep.subr.bf16.mxu0 0
  %106 = vmatpush1.bf16.msra.mxu0 %v96
  %107 = vmatprep.subr.bf16.mxu0 0
  %108 = vmatpush1.bf16.msra.mxu0 0
  %109 = vmatprep.subr.bf16.mxu0 0
  %110 = vmatpush1.bf16.msra.mxu0 0
  %111 = vmatprep.subr.bf16.mxu0 0
  %112 = vmatpush1.bf16.msra.mxu0 0
  %113 = vmatprep.subr.bf16.mxu0 0
  %114 = vmatpush1.bf16.msra.mxu0 0
  %115 = vmatprep.subr.bf16.mxu0 0
  %116 = vmatpush1.bf16.msra.mxu0 0
  %117 = vmatprep.subr.bf16.mxu0 0
  %118 = vmatpush1.bf16.msra.mxu0 0
  %119 = vmatprep.subr.bf16.mxu0 0
  %120 = vmatpush1.bf16.msra.mxu0 0
  %121 = vmatprep.subr.bf16.mxu0 0
  %122 = vmatpush1.bf16.msra.mxu0 0
  %123 = vmatprep.subr.bf16.mxu0 0
  %124 = vmatpush1.bf16.msra.mxu0 0
  %125 = vmatprep.subr.bf16.mxu0 0
  %126 = vmatpush1.bf16.msra.mxu0 0
  %127 = vmatprep.subr.bf16.mxu0 0
  %128 = vmatpush1.bf16.msra.mxu0 0
  %129 = vmatprep.subr.bf16.mxu0 0
  %130 = vmatpush1.bf16.msra.mxu0 0
  %131 = vmatprep.subr.bf16.mxu0 0
  %132 = vmatpush1.bf16.msra.mxu0 0
  %133 = vmatprep.subr.bf16.mxu0 0
  %134 = vmatpush1.bf16.msra.mxu0 0
  %135 = vmatprep.mubr.bf16.mxu0 0
  %136 = vmatmul.mubr.bf16.gmra.mrb[0].mxu0 %v101
  %v137 = vpop.f32.mrb[0].mxu0
  %v138 = vadd.f32 %v85, %v137
  %v139 = vpop.f32.mrb[0].mxu0
  %v140 = vpop.f32.mrb[0].mxu0
  %v141 = vadd.f32 %v85, %v140
  %v142 = vpop.f32.mrb[0].mxu0
  %143 = vdwg.mxu0
  %v144 = vmul.f32 %v138, 0.5
  %v145 = vmul.f32 %v141, 0.5
  %v146 = vmul.f32 %v138, 0.044715
  %v147 = vmul.f32 %v141, 0.044715
  %v148 = vmul.f32 %v146, %v138
  %v149 = vmul.f32 %v147, %v141
  %v150 = vmul.f32 %v148, %v138
  %v151 = vmul.f32 %v149, %v141
  %v152 = vadd.f32 %v138, %v150
  %v153 = vadd.f32 %v141, %v151
  %v154 = vmul.f32 %v152, 0.7978846
  %v155 = vmul.f32 %v153, 0.7978846
  %v156 = vtanh.pop %v154
  %v157 = vtanh.pop %v155
  %v158 = vadd.f32 %v156, 1.0
  %v159 = vadd.f32 %v157, 1.0
  %v160 = vmul.f32 %v144, %v158
  %v161 = vmul.f32 %v145, %v159
  %v162 = vpack.c.bf16 %v161, %v160
  %v164 = vunpack.c.l.b16 %v162
  %v165 = vunpack.c.h.b16 %v162
  %v166 = vpack.c.b16 %v164, %v164
  %v167 = vpack.c.b16 %v165, %v165
  %170 = vst [vmem:[%s5] sm:$0xf] %v166
  %171 = vst [vmem:[%s5 + $0x4] sm:$0xf] %v167
  // Predicated region
  $region26: #{gpt2_logits.14} parent=0 // pred_check
    _
  $region27: #{gpt2_logits.14} parent=0 // pred_check_branch
    %173 = sbr.rel (0) target = $region29
  $region28: #{gpt2_logits.14} parent=0 // pred_region
    _
  $region29: #{gpt2_logits.14} parent=0 // pred_fallthru
    _
  // Predicated region
  $region30: #{gpt2_logits.14} parent=0 // pred_check
    _
  $region31: #{gpt2_logits.14} parent=0 // pred_check_branch
    %175 = sbr.rel (0) target = $region33
  $region32: #{gpt2_logits.14} parent=0 // pred_region
    _
  $region33: #{gpt2_logits.14} parent=0 // pred_fallthru
    _

// kernel: gpt2_logits.15
$region0: #{gpt2_logits.15}
  #allocation0 [shape = 'u32[]', space=smem, size = 0x4, offset = 0x4, fixed_abs, tag = 'smem constant byte address 0x4 - core index']
  #allocation1 [shape = 'u32[144,128]{1,0:T(1,128)}', space=vmem, size = 0x12000, scoped, tag = 'internal scratch']
  %s0 = inlined_call_operand.vmem [shape: bf16[16,128], index: 0, kind: input, shape index: {}]
  %s1 = inlined_call_operand.vmem [shape: bf16[128,32], index: 1, kind: input, shape index: {}]
  %s2 = inlined_call_operand.vmem [shape: f32[1,32], index: 2, kind: input, shape index: {}]
  %s3 = inlined_call_operand.vmem [shape: f32[16,32], index: 3, kind: input, shape index: {}]
  %s4 = inlined_call_operand.vmem [shape: f32[16,32], index: 4, kind: output, shape index: {}]
  %s5 = sld [smem:[#allocation0]]
  $region26: #{gpt2_logits.15} parent=0
    _
  %s7 = ssub.s32 1, %s5
  %s8 = scalar_select 0, %s7, %s5
  // Predicated region
  $region2: #{gpt2_logits.15} parent=0 // pred_check
    _
  $region3: #{gpt2_logits.15} parent=0 // pred_check_branch
    %10 = sbr.rel (0) target = $region5
  $region4: #{gpt2_logits.15} parent=0 // pred_region
    _
  $region5: #{gpt2_logits.15} parent=0 // pred_fallthru
    _
  // Predicated region
  $region6: #{gpt2_logits.15} parent=0 // pred_check
    _
  $region7: #{gpt2_logits.15} parent=0 // pred_check_branch
    %12 = sbr.rel (0) target = $region9
  $region8: #{gpt2_logits.15} parent=0 // pred_region
    _
  $region9: #{gpt2_logits.15} parent=0 // pred_fallthru
    _
  // Predicated region
  $region10: #{gpt2_logits.15} parent=0 // pred_check
    _
  $region11: #{gpt2_logits.15} parent=0 // pred_check_branch
    %14 = sbr.rel (0) target = $region13
  $region12: #{gpt2_logits.15} parent=0 // pred_region
    _
  $region13: #{gpt2_logits.15} parent=0 // pred_fallthru
    _
  // Predicated region
  $region14: #{gpt2_logits.15} parent=0 // pred_check
    _
  $region15: #{gpt2_logits.15} parent=0 // pred_check_branch
    %16 = sbr.rel (0) target = $region17
  $region16: #{gpt2_logits.15} parent=0 // pred_region
    _
  $region17: #{gpt2_logits.15} parent=0 // pred_fallthru
    _
  %v18 = vld [vmem:[%s0] sm:$0xf]
  %v19 = vld [vmem:[%s0 + $0x4] sm:$0xf]
  %v20 = vld [vmem:[%s1] sm:$0xf]
  %v21 = vld [vmem:[%s1 + $0x4] sm:$0xf]
  %v22 = vld [vmem:[%s1 + $0x8] sm:$0xf]
  %v23 = vld [vmem:[%s1 + $0xc] sm:$0xf]
  %v24 = vld [vmem:[%s1 + $0x10] sm:$0xf]
  %v25 = vld [vmem:[%s1 + $0x14] sm:$0xf]
  %v26 = vld [vmem:[%s1 + $0x18] sm:$0xf]
  %v27 = vld [vmem:[%s1 + $0x1c] sm:$0xf]
  %v28 = vld [vmem:[%s1 + $0x20] sm:$0xf]
  %v29 = vld [vmem:[%s1 + $0x24] sm:$0xf]
  %v30 = vld [vmem:[%s1 + $0x28] sm:$0xf]
  %v31 = vld [vmem:[%s1 + $0x2c] sm:$0xf]
  %v32 = vld [vmem:[%s1 + $0x30] sm:$0xf]
  %v33 = vld [vmem:[%s1 + $0x34] sm:$0xf]
  %v34 = vld [vmem:[%s1 + $0x38] sm:$0xf]
  %v35 = vld [vmem:[%s1 + $0x3c] sm:$0xf]
  %v36 = vld [vmem:[%s2] sm:$0x1]
  %v38 = vlaneseq
  %v39 = vshrl.u32 %v38, 7
  %v40 = vsub.s32 0, %v39
  %v41 = vrot.slane %v36, %v40
  %v45 = vunpack.c.l.b16 %v18
  %v46 = vunpack.c.l.b16 %v19
  %v47 = vpack.c.b16 %v46, %v45
  %v65 = vunpack.c.l.b16 %v20
  %v66 = vunpack.c.l.b16 %v21
  %v67 = vunpack.c.l.b16 %v22
  %v68 = vunpack.c.l.b16 %v23
  %v69 = vunpack.c.l.b16 %v24
  %v70 = vunpack.c.l.b16 %v25
  %v71 = vunpack.c.l.b16 %v26
  %v72 = vunpack.c.l.b16 %v27
  %v73 = vunpack.c.l.b16 %v28
  %v74 = vunpack.c.l.b16 %v29
  %v75 = vunpack.c.l.b16 %v30
  %v76 = vunpack.c.l.b16 %v31
  %v77 = vunpack.c.l.b16 %v32
  %v78 = vunpack.c.l.b16 %v33
  %v79 = vunpack.c.l.b16 %v34
  %v80 = vunpack.c.l.b16 %v35
  %v81 = vpack.c.b16 %v66, %v65
  %v82 = vpack.c.b16 %v68, %v67
  %v83 = vpack.c.b16 %v70, %v69
  %v84 = vpack.c.b16 %v72, %v71
  %v85 = vpack.c.b16 %v74, %v73
  %v86 = vpack.c.b16 %v76, %v75
  %v87 = vpack.c.b16 %v78, %v77
  %v88 = vpack.c.b16 %v80, %v79
  %97 = vmatprep.subr.bf16.mxu0 0
  %98 = vmatpush1.bf16.msra.mxu0 %v81
  %99 = vmatprep.subr.bf16.mxu0 0
  %100 = vmatpush1.bf16.msra.mxu0 %v82
  %101 = vmatprep.subr.bf16.mxu0 0
  %102 = vmatpush1.bf16.msra.mxu0 %v83
  %103 = vmatprep.subr.bf16.mxu0 0
  %104 = vmatpush1.bf16.msra.mxu0 %v84
  %105 = vmatprep.subr.bf16.mxu0 0
  %106 = vmatpush1.bf16.msra.mxu0 %v85
  %107 = vmatprep.subr.bf16.mxu0 0
  %108 = vmatpush1.bf16.msra.mxu0 %v86
  %109 = vmatprep.subr.bf16.mxu0 0
  %110 = vmatpush1.bf16.msra.mxu0 %v87
  %111 = vmatprep.subr.bf16.mxu0 0
  %112 = vmatpush1.bf16.msra.mxu0 %v88
  %113 = vmatprep.subr.bf16.mxu0 0
  %114 = vmatpush1.bf16.msra.mxu0 0
  %115 = vmatprep.subr.bf16.mxu0 0
  %116 = vmatpush1.bf16.msra.mxu0 0
  %117 = vmatprep.subr.bf16.mxu0 0
  %118 = vmatpush1.bf16.msra.mxu0 0
  %119 = vmatprep.subr.bf16.mxu0 0
  %120 = vmatpush1.bf16.msra.mxu0 0
  %121 = vmatprep.subr.bf16.mxu0 0
  %122 = vmatpush1.bf16.msra.mxu0 0
  %123 = vmatprep.subr.bf16.mxu0 0
  %124 = vmatpush1.bf16.msra.mxu0 0
  %125 = vmatprep.subr.bf16.mxu0 0
  %126 = vmatpush1.bf16.msra.mxu0 0
  %127 = vmatprep.subr.bf16.mxu0 0
  %128 = vmatpush1.bf16.msra.mxu0 0
  %129 = vmatprep.mubr.bf16.mxu0 0
  %130 = vmatmul.mubr.bf16.gmra.mrb[0].mxu0 %v47
  %v131 = vpop.f32.mrb[0].mxu0
  %v132 = vadd.f32 %v41, %v131
  %v133 = vpop.f32.mrb[0].mxu0
  %v134 = vpop.f32.mrb[0].mxu0
  %v135 = vadd.f32 %v41, %v134
  %v136 = vpop.f32.mrb[0].mxu0
  %137 = vdwg.mxu0
  %v138 = vld [vmem:[%s3] sm:$0xff]
  %v139 = vld [vmem:[%s3 + $0x8] sm:$0xff]
  %v140 = vadd.f32 %v132, %v138
  %v141 = vadd.f32 %v135, %v139
  %vm142 = vcmask 261120
  %143 = vst.msk [vmem:[%s4] sm:$0xff] %vm142, %v140
  %144 = vst.msk [vmem:[%s4 + $0x8] sm:$0xff] %vm142, %v141
  // Predicated region
  $region18: #{gpt2_logits.15} parent=0 // pred_check
    _
  $region19: #{gpt2_logits.15} parent=0 // pred_check_branch
    %146 = sbr.rel (0) target = $region21
  $region20: #{gpt2_logits.15} parent=0 // pred_region
    _
  $region21: #{gpt2_logits.15} parent=0 // pred_fallthru
    _
  // Predicated region
  $region22: #{gpt2_logits.15} parent=0 // pred_check
    _
  $region23: #{gpt2_logits.15} parent=0 // pred_check_branch
    %148 = sbr.rel (0) target = $region25
  $region24: #{gpt2_logits.15} parent=0 // pred_region
    _
  $region25: #{gpt2_logits.15} parent=0 // pred_fallthru
    _

// kernel: gpt2_logits.21
$region0: #{gpt2_logits.21}
  #allocation0 [shape = 'u32[]', space=smem, size = 0x4, offset = 0x4, fixed_abs, tag = 'smem constant byte address 0x4 - core index']
  #allocation1 [shape = 'u32[144,128]{1,0:T(1,128)}', space=vmem, size = 0x12000, scoped, tag = 'internal scratch']
  #allocation2 [shape = 'bf16[16,32]{1,0:T(16,128)(2,1)}', space=vmem, size = 0x1000, scoped, tag = 'scratch operand']
  %s0 = inlined_call_operand.vmem [shape: f32[16,32], index: 0, kind: input, shape index: {}]
  %s1 = inlined_call_operand.vmem [shape: f32[1,32], index: 1, kind: input, shape index: {}]
  %s2 = inlined_call_operand.vmem [shape: f32[1,32], index: 2, kind: input, shape index: {}]
  %s3 = inlined_call_operand.vmem [shape: bf16[64,32], index: 3, kind: input, shape index: {}]
  %s4 = inlined_call_operand.hbm [shape: f32[16,64], index: 4, kind: output, shape index: {}]
  %s5 = sld [smem:[#allocation0]]
  $region30: #{gpt2_logits.21} parent=0
    _
  %s7 = ssub.s32 1, %s5
  %s8 = scalar_select 0, %s7, %s5
  $region1: #{gpt2_logits.21} parent=0
    #allocation3 [shape = 'u8[8192]{0}', space=vmem, size = 0x2000, scoped, tag = 'output window, operand 0, single buffered']
    #allocation4 [shape = 's32[1]{0}', space=sflag, size = 0x4, scoped, tag = 'scoped memory for gpt2_logits.21']
    %9 = vsyncpa [#allocation4], 0
    // Predicated region
    $region2: #{gpt2_logits.21} parent=1 // pred_check
      _
    $region3: #{gpt2_logits.21} parent=1 // pred_check_branch
      %11 = sbr.rel (0) target = $region5
    $region4: #{gpt2_logits.21} parent=1 // pred_region
      _
    $region5: #{gpt2_logits.21} parent=1 // pred_fallthru
      _
    // Predicated region
    $region6: #{gpt2_logits.21} parent=1 // pred_check
      _
    $region7: #{gpt2_logits.21} parent=1 // pred_check_branch
      %13 = sbr.rel (0) target = $region9
    $region8: #{gpt2_logits.21} parent=1 // pred_region
      _
    $region9: #{gpt2_logits.21} parent=1 // pred_fallthru
      _
    // Predicated region
    $region10: #{gpt2_logits.21} parent=1 // pred_check
      _
    $region11: #{gpt2_logits.21} parent=1 // pred_check_branch
      %15 = sbr.rel (0) target = $region13
    $region12: #{gpt2_logits.21} parent=1 // pred_region
      _
    $region13: #{gpt2_logits.21} parent=1 // pred_fallthru
      _
    // Predicated region
    $region14: #{gpt2_logits.21} parent=1 // pred_check
      _
    $region15: #{gpt2_logits.21} parent=1 // pred_check_branch
      %17 = sbr.rel (0) target = $region17
    $region16: #{gpt2_logits.21} parent=1 // pred_region
      _
    $region17: #{gpt2_logits.21} parent=1 // pred_fallthru
      _
    %p19 = scmp.eq.s32.totalorder 0, 0
    // Predicated region
    $region18: #{gpt2_logits.21} parent=1 // pred_check
      %p20 = pneg %p19
    $region19: #{gpt2_logits.21} parent=1 // pred_check_branch
      %22 = sbr.rel (%p20) target = $region21
    $region20: #{gpt2_logits.21} parent=1 // pred_region
      %v23 = vld [vmem:[%s0] sm:$0xff]
      %v24 = vld [vmem:[%s0 + $0x8] sm:$0xff]
      %vm25 = vcmask 261120
      %v26 = vsel %vm25, %v23, 0.0
      %27 = vadd.xlane.f32.xlu0 %v26
      %v28 = vpop.xlane.xlu0 %27
      %v29 = vsel %vm25, %v24, 0.0
      %30 = vadd.xlane.f32.xlu0 %v29
      %v31 = vpop.xlane.xlu0 %30
      %v32 = vrcp.pop 32.0
      %v33 = vmul.f32 %v28, %v32
      %v34 = vmul.f32 %v31, %v32
      %v35 = vsub.f32 %v23, %v33
      %v36 = vsub.f32 %v24, %v34
      %v37 = vmul.f32 %v35, %v35
      %v38 = vmul.f32 %v36, %v36
      %v39 = vsel %vm25, %v37, 0.0
      %40 = vadd.xlane.f32.xlu0 %v39
      %v41 = vpop.xlane.xlu0 %40
      %v42 = vsel %vm25, %v38, 0.0
      %43 = vadd.xlane.f32.xlu0 %v42
      %v44 = vpop.xlane.xlu0 %43
      %v45 = vmul.f32 %v41, %v32
      %v46 = vmul.f32 %v44, %v32
      %v47 = vadd.f32 %v45, 1e-05
      %v48 = vadd.f32 %v46, 1e-05
      %v49 = vrsqrt.pop %v47
      %v50 = vrsqrt.pop %v48
      %v51 = vmul.f32 %v35, %v49
      %v52 = vmul.f32 %v36, %v50
      %v53 = vld [vmem:[%s1] sm:$0x1]
      %v55 = vlaneseq
      %v56 = vshrl.u32 %v55, 7
      %v57 = vsub.s32 0, %v56
      %v58 = vrot.slane %v53, %v57
      %v60 = vmul.f32 %v51, %v58
      %v61 = vmul.f32 %v52, %v58
      %v62 = vld [vmem:[%s2] sm:$0x1]
      %v64 = vlaneseq
      %v65 = vshrl.u32 %v64, 7
      %v66 = vsub.s32 0, %v65
      %v67 = vrot.slane %v62, %v66
      %v69 = vadd.f32 %v60, %v67
      %v70 = vadd.f32 %v61, %v67
      %v71 = vpack.c.bf16 %v70, %v69
      %72 = vst.msk [vmem:[#allocation2] sm:$0xff] %vm25, %v71
    $region21: #{gpt2_logits.21} parent=1 // pred_fallthru
      _
    %v73 = vld [vmem:[#allocation2] sm:$0xff]
    %v74 = vld [vmem:[%s3] sm:$0xf]
    %v75 = vld [vmem:[%s3 + $0x4] sm:$0xf]
    %v76 = vld [vmem:[%s3 + $0x8] sm:$0xf]
    %v77 = vld [vmem:[%s3 + $0xc] sm:$0xf]
    %v78 = vld [vmem:[%s3 + $0x10] sm:$0xf]
    %v79 = vld [vmem:[%s3 + $0x14] sm:$0xf]
    %v80 = vld [vmem:[%s3 + $0x18] sm:$0xf]
    %v81 = vld [vmem:[%s3 + $0x1c] sm:$0xf]
    %v90 = vunpack.c.l.b16 %v74
    %v91 = vunpack.c.l.b16 %v75
    %v92 = vunpack.c.l.b16 %v76
    %v93 = vunpack.c.l.b16 %v77
    %v94 = vunpack.c.l.b16 %v78
    %v95 = vunpack.c.l.b16 %v79
    %v96 = vunpack.c.l.b16 %v80
    %v97 = vunpack.c.l.b16 %v81
    %v98 = vpack.c.b16 %v91, %v90
    %v99 = vpack.c.b16 %v93, %v92
    %v100 = vpack.c.b16 %v95, %v94
    %v101 = vpack.c.b16 %v97, %v96
    %vm102 = vcmask 261120
    %v104 = vsel %vm102, %v73, 0
    %v107 = vsel %vm102, %v98, 0
    %v110 = vsel %vm102, %v99, 0
    %v113 = vsel %vm102, %v100, 0
    %v116 = vsel %vm102, %v101, 0
    %118 = vmatprep.subr.bf16.mxu0 0
    %119 = vmatpush1.bf16.xpose.msra.mxu0 %v107
    %120 = vmatprep.subr.bf16.mxu0 0
    %121 = vmatpush1.bf16.xpose.msra.mxu0 %v110
    %122 = vmatprep.subr.bf16.mxu0 0
    %123 = vmatpush1.bf16.xpose.msra.mxu0 %v113
    %124 = vmatprep.subr.bf16.mxu0 0
    %125 = vmatpush1.bf16.xpose.msra.mxu0 %v116
    %126 = vmatprep.subr.bf16.mxu0 0
    %127 = vmatpush1.bf16.xpose.msra.mxu0 0
    %128 = vmatprep.subr.bf16.mxu0 0
    %129 = vmatpush1.bf16.xpose.msra.mxu0 0
    %130 = vmatprep.subr.bf16.mxu0 0
    %131 = vmatpush1.bf16.xpose.msra.mxu0 0
    %132 = vmatprep.subr.bf16.mxu0 0
    %133 = vmatpush1.bf16.xpose.msra.mxu0 0
    %134 = vmatprep.subr.bf16.mxu0 0
    %135 = vmatpush1.bf16.xpose.msra.mxu0 0
    %136 = vmatprep.subr.bf16.mxu0 0
    %137 = vmatpush1.bf16.xpose.msra.mxu0 0
    %138 = vmatprep.subr.bf16.mxu0 0
    %139 = vmatpush1.bf16.xpose.msra.mxu0 0
    %140 = vmatprep.subr.bf16.mxu0 0
    %141 = vmatpush1.bf16.xpose.msra.mxu0 0
    %142 = vmatprep.subr.bf16.mxu0 0
    %143 = vmatpush1.bf16.xpose.msra.mxu0 0
    %144 = vmatprep.subr.bf16.mxu0 0
    %145 = vmatpush1.bf16.xpose.msra.mxu0 0
    %146 = vmatprep.subr.bf16.mxu0 0
    %147 = vmatpush1.bf16.xpose.msra.mxu0 0
    %148 = vmatprep.subr.bf16.mxu0 0
    %149 = vmatpush1.bf16.xpose.msra.mxu0 0
    %150 = vmatprep.mubr.bf16.mxu0 0
    %151 = vmatmul.mubr.bf16.gmra.mrb[0].mxu0 %v104
    %v152 = vpop.f32.mrb[0].mxu0
    %v153 = vadd.f32 0.0, %v152
    %v154 = vpop.f32.mrb[0].mxu0
    %v155 = vpop.f32.mrb[0].mxu0
    %v156 = vadd.f32 0.0, %v155
    %v157 = vpop.f32.mrb[0].mxu0
    %158 = vdwg.mxu0
    %vm159 = vcmask 523264
    %160 = vst.msk [vmem:[#allocation3] sm:$0xff] %vm159, %v153
    %161 = vst.msk [vmem:[#allocation3 + $0x8] sm:$0xff] %vm159, %v156
    // Predicated region
    $region22: #{gpt2_logits.21} parent=1 // pred_check
      _
    $region23: #{gpt2_logits.21} parent=1 // pred_check_branch
      %163 = sbr.rel (0) target = $region25
    $region24: #{gpt2_logits.21} parent=1 // pred_region
      %s165 = ssub.s32 256, 256
      %166 = vsyncadd [#allocation4], %s165
      %s167 = sshll.u32 [#allocation3], 4
      %s168 = int_to_ptr.vmem [resolvable:$true] %s167
      %173 = dma.vmem_to_hbm [thread:$0]  %s168, 256, %s4, [#allocation4], 128, 128, 8
    $region25: #{gpt2_logits.21} parent=1 // pred_fallthru
      _
    // Predicated region
    $region26: #{gpt2_logits.21} parent=1 // pred_check
      _
    $region27: #{gpt2_logits.21} parent=1 // pred_check_branch
      %175 = sbr.rel (0) target = $region29
    $region28: #{gpt2_logits.21} parent=1 // pred_region
      %176 = dma.done [#allocation4], 256
    $region29: #{gpt2_logits.21} parent=1 // pred_fallthru
      _
    %177 = vsyncpa [#allocation4], 1

</llo_original>
